<compile_context>
chip_gen: v7x
topology: tpu7x:2x2x1
jax: 0.10.0
libtpu: 0.0.40
codegen_flags: <defaults>
</compile_context>

<pallas_src>
import math

import jax
import jax.numpy as jnp
from jax.experimental import pallas as pl
from jax.experimental.pallas import tpu as pltpu

# ---- scaled-down "bert_base" config (synthetic weights, not a checkpoint) ----
VOCAB = 64
TYPE_VOCAB = 2
MAX_POS = 16
HIDDEN = 32          # stands in for 768
N_LAYERS = 2         # stands in for 12
N_HEADS = 2          # stands in for 12
HEAD_DIM = HIDDEN // N_HEADS
FFN = 64             # stands in for 3072
NUM_TAGS = 64        # stands in for 10000
LN_EPS = 1e-12       # BERT LayerNorm eps


# ----------------------------- fused Pallas kernel ---------------------------
def _layernorm(x, gamma, beta):
    """LayerNorm over the last (hidden) axis, f32."""
    mu = jnp.mean(x, axis=-1, keepdims=True)
    var = jnp.mean(jnp.square(x - mu), axis=-1, keepdims=True)
    return (x - mu) * jax.lax.rsqrt(var + LN_EPS) * gamma + beta


def _textnet_kernel(emb_ref, neg_mask_ref, ln_emb_ref,
                    wqkv_ref, bqkv_ref, wo_ref, bo_ref,
                    w1_ref, b1_ref, w2_ref, b2_ref,
                    ln1_ref, ln2_ref, cls_w_ref, cls_b_ref,
                    tag_ref, emb_out_ref,
                    x_scr):
    """One grid step = one (batch element, encoder layer).

    The activation x lives in VMEM scratch and is carried across the layer
    axis.  Layer 0 also applies the embedding LayerNorm; the last layer also
    runs the CLS head (relu -> cls matmul -> sigmoid)."""
    layer = pl.program_id(1)
    n_layers = pl.num_programs(1)

    # --- layer 0: embedding LayerNorm ----------------------------------------
    @pl.when(layer == 0)
    def _():
        x_scr[...] = _layernorm(emb_ref[...],
                                ln_emb_ref[0:1, :], ln_emb_ref[1:2, :])

    x = x_scr[...]                              # [S, D] f32
    xb = x.astype(jnp.bfloat16)

    # --- fused QKV projection (single MXU pass, lane width 3*D) --------------
    qkv = jnp.dot(xb, wqkv_ref[...],
                  preferred_element_type=jnp.float32) + bqkv_ref[...]
    q = qkv[:, 0:HIDDEN]
    k = qkv[:, HIDDEN:2 * HIDDEN]
    v = qkv[:, 2 * HIDDEN:3 * HIDDEN]

    # BERT additive padding mask, kept in f32 (precomputed in the wrapper).
    neg_mask = neg_mask_ref[...]                         # [1, S]
    scale = 1.0 / math.sqrt(HEAD_DIM)

    # --- per-head attention (static unroll over the few heads) ---------------
    ctx_heads = []
    for h in range(N_HEADS):
        sl = slice(h * HEAD_DIM, (h + 1) * HEAD_DIM)
        # fold the 1/sqrt(Dh) scale into Q (cheaper than scaling [S, S] scores)
        qh = (q[:, sl] * scale).astype(jnp.bfloat16)     # [S, Dh]
        kh = k[:, sl].astype(jnp.bfloat16)               # [S, Dh]
        vh = v[:, sl].astype(jnp.bfloat16)               # [S, Dh]
        s_h = jax.lax.dot_general(                       # q @ k^T  -> [S, S]
            qh, kh, (((1,), (1,)), ((), ())),
            preferred_element_type=jnp.float32)
        s_h = s_h + neg_mask                             # f32 softmax
        s_h = s_h - jnp.max(s_h, axis=-1, keepdims=True)
        p = jnp.exp(s_h)
        p = p * pl.reciprocal(jnp.sum(p, axis=-1, keepdims=True), approx=True)
        ctx_heads.append(jnp.dot(p.astype(jnp.bfloat16), vh,
                                 preferred_element_type=jnp.float32))
    ctx = jnp.concatenate(ctx_heads, axis=-1)            # [S, D]

    # --- attention output projection + residual LayerNorm --------------------
    attn = jnp.dot(ctx.astype(jnp.bfloat16), wo_ref[...],
                   preferred_element_type=jnp.float32) + bo_ref[...]
    x1 = _layernorm(attn + x, ln1_ref[0:1, :], ln1_ref[1:2, :])

    # --- FFN (GELU) + residual LayerNorm --------------------------------------
    h1 = jnp.dot(x1.astype(jnp.bfloat16), w1_ref[...],
                 preferred_element_type=jnp.float32) + b1_ref[...]
    # TODO(synk): PyTorch nn.GELU uses the exact erf form; tanh approximation
    # is used here for guaranteed Mosaic lowering (difference < 1e-3).
    h1 = jax.nn.gelu(h1, approximate=True)
    ffn = jnp.dot(h1.astype(jnp.bfloat16), w2_ref[...],
                  preferred_element_type=jnp.float32) + b2_ref[...]
    x2 = _layernorm(ffn + x1, ln2_ref[0:1, :], ln2_ref[1:2, :])
    x_scr[...] = x2

    # --- last layer: CLS head (relu -> cls matmul -> sigmoid), fused ---------
    @pl.when(layer == n_layers - 1)
    def _():
        x_cls = x2[0:1, :]                               # CLS token embedding
        emb_out_ref[...] = x_cls
        z = jnp.dot(jnp.maximum(x_cls, 0.0).astype(jnp.bfloat16), cls_w_ref[...],
                    preferred_element_type=jnp.float32) + cls_b_ref[...]
        tag_ref[...] = jax.nn.sigmoid(z)


# ------------------------------- parameters ----------------------------------
def init_params(key):
    def normal(k, shape, dtype=jnp.float32):
        return (0.02 * jax.random.normal(k, shape, dtype=jnp.float32)).astype(dtype)

    d, f, L, t = HIDDEN, FFN, N_LAYERS, NUM_TAGS
    keys = iter(jax.random.split(key, 16))
    ln_init = jnp.stack([jnp.ones((d,), jnp.float32),       # [2, D]: gamma, beta
                         jnp.zeros((d,), jnp.float32)])
    return {
        # embedding tables (gathers stay in plain JAX)
        "word_emb": normal(next(keys), (VOCAB, d)),
        "pos_emb": normal(next(keys), (MAX_POS, d)),
        "type_emb": normal(next(keys), (TYPE_VOCAB, d)),
        "ln_emb": ln_init,
        # per-layer weights, stacked over layers (matmul weights in bf16)
        "wqkv": normal(next(keys), (L, d, 3 * d), jnp.bfloat16),
        "bqkv": jnp.zeros((L, 1, 3 * d), jnp.float32),
        "wo":   normal(next(keys), (L, d, d), jnp.bfloat16),
        "bo":   jnp.zeros((L, 1, d), jnp.float32),
        "w1":   normal(next(keys), (L, d, f), jnp.bfloat16),
        "b1":   jnp.zeros((L, 1, f), jnp.float32),
        "w2":   normal(next(keys), (L, f, d), jnp.bfloat16),
        "b2":   jnp.zeros((L, 1, d), jnp.float32),
        "ln1":  jnp.tile(ln_init[None], (L, 1, 1)),
        "ln2":  jnp.tile(ln_init[None], (L, 1, 1)),
        # tag head
        "cls_w": normal(next(keys), (d, t), jnp.bfloat16),
        "cls_b": jnp.zeros((1, t), jnp.float32),
    }


# -------------------------------- forward ------------------------------------
def textnet_forward(params, input_ids, token_type_ids, attention_mask):
    """Equivalent of TEXTNET.forward(text=(input_ids, token_type_ids, mask))."""
    b, s = input_ids.shape
    d, f, t = HIDDEN, FFN, NUM_TAGS

    # Embedding gathers are glue (plain JAX); everything downstream is one
    # fused Pallas kernel.
    emb = (params["word_emb"][input_ids]
           + params["pos_emb"][None, :s, :]
           + params["type_emb"][token_type_ids]).astype(jnp.float32)
    # Precompute the additive padding mask once (instead of per layer in-kernel).
    neg_mask = ((1.0 - attention_mask.astype(jnp.float32)) * (-10000.0)
                ).reshape(b, 1, s)

    def per_batch(shape):
        return pl.BlockSpec(shape, lambda bi, li: (bi, 0, 0))

    def per_layer(shape):
        return pl.BlockSpec(shape, lambda bi, li: (li, 0, 0))

    def shared(shape):
        return pl.BlockSpec(shape, lambda bi, li: (0, 0))

    tag_probs, embeddings = pl.pallas_call(
        _textnet_kernel,
        grid=(b, N_LAYERS),
        in_specs=[
            per_batch((None, s, d)),         # emb          [B, S, D]
            per_batch((None, 1, s)),         # neg_mask     [B, 1, S]
            shared((2, d)),                  # ln_emb       [2, D]
            per_layer((None, d, 3 * d)),     # wqkv         [L, D, 3D]
            per_layer((None, 1, 3 * d)),     # bqkv
            per_layer((None, d, d)),         # wo
            per_layer((None, 1, d)),         # bo
            per_layer((None, d, f)),         # w1
            per_layer((None, 1, f)),         # b1
            per_layer((None, f, d)),         # w2
            per_layer((None, 1, d)),         # b2
            per_layer((None, 2, d)),         # ln1
            per_layer((None, 2, d)),         # ln2
            shared((d, t)),                  # cls_w
            shared((1, t)),                  # cls_b
        ],
        out_specs=[
            pl.BlockSpec((None, 1, t), lambda bi, li: (bi, 0, 0)),
            pl.BlockSpec((None, 1, d), lambda bi, li: (bi, 0, 0)),
        ],
        out_shape=[
            jax.ShapeDtypeStruct((b, 1, t), jnp.float32),   # tag_probs
            jax.ShapeDtypeStruct((b, 1, d), jnp.float32),   # CLS embeddings
        ],
        scratch_shapes=[pltpu.VMEM((s, d), jnp.float32)],   # activation slab
        compiler_params=pltpu.CompilerParams(
            dimension_semantics=("parallel", "arbitrary")),
    )(emb, neg_mask, params["ln_emb"],
      params["wqkv"], params["bqkv"], params["wo"], params["bo"],
      params["w1"], params["b1"], params["w2"], params["b2"],
      params["ln1"], params["ln2"], params["cls_w"], params["cls_b"])

    # TODO(synk): BinaryFocalLoss is defined outside the given module; only the
    # tag_labels=None branch (tag_probs, embeddings) is implemented.
    return tag_probs.reshape(b, t), embeddings.reshape(b, d)


if __name__ == "__main__":
    key = jax.random.PRNGKey(0)
    pkey, ikey = jax.random.split(key)
    params = init_params(pkey)

    B, S = 2, 8
    input_ids = jax.random.randint(ikey, (B, S), 0, VOCAB, dtype=jnp.int32)
    token_type_ids = jnp.zeros((B, S), jnp.int32)
    attention_mask = jnp.array([[1] * S, [1] * 6 + [0] * 2], dtype=jnp.int32)

    fwd = jax.jit(textnet_forward)
    tag_probs, embeddings = fwd(params, input_ids, token_type_ids, attention_mask)
    jax.block_until_ready((tag_probs, embeddings))

    assert tag_probs.shape == (B, NUM_TAGS)
    assert embeddings.shape == (B, HIDDEN)
    assert bool(jnp.all((tag_probs >= 0.0) & (tag_probs <= 1.0)))
    assert bool(jnp.all(jnp.isfinite(tag_probs))) and bool(jnp.all(jnp.isfinite(embeddings)))
    print("KERNEL_OK")
</pallas_src>

<mosaic_0001>
module attributes {stable_mosaic.version = 11 : i64} {
  func.func @_textnet_kernel(%arg0: i32, %arg1: i32, %arg2: memref<1x8x32xf32, #tpu.memory_space<vmem>>, %arg3: memref<1x1x8xf32, #tpu.memory_space<vmem>>, %arg4: memref<2x32xf32, #tpu.memory_space<vmem>>, %arg5: memref<1x32x96xbf16, #tpu.memory_space<vmem>>, %arg6: memref<1x1x96xf32, #tpu.memory_space<vmem>>, %arg7: memref<1x32x32xbf16, #tpu.memory_space<vmem>>, %arg8: memref<1x1x32xf32, #tpu.memory_space<vmem>>, %arg9: memref<1x32x64xbf16, #tpu.memory_space<vmem>>, %arg10: memref<1x1x64xf32, #tpu.memory_space<vmem>>, %arg11: memref<1x64x32xbf16, #tpu.memory_space<vmem>>, %arg12: memref<1x1x32xf32, #tpu.memory_space<vmem>>, %arg13: memref<1x2x32xf32, #tpu.memory_space<vmem>>, %arg14: memref<1x2x32xf32, #tpu.memory_space<vmem>>, %arg15: memref<32x64xbf16, #tpu.memory_space<vmem>>, %arg16: memref<1x64xf32, #tpu.memory_space<vmem>>, %arg17: memref<1x1x64xf32, #tpu.memory_space<vmem>>, %arg18: memref<1x1x32xf32, #tpu.memory_space<vmem>>, %arg19: memref<8x32xf32, #tpu.memory_space<vmem>>) attributes {dimension_semantics = [#tpu.dimension_semantics<parallel>, #tpu.dimension_semantics<arbitrary>], iteration_bounds = array<i64: 2, 2>, scalar_prefetch = 0 : i64, scratch_operands = 1 : i64, tpu.core_type = #tpu.core_type<tc>, window_params = [{transform_indices = @transform_0, window_bounds = array<i64: 1, 8, 32>}, {transform_indices = @transform_1, window_bounds = array<i64: 1, 1, 8>}, {pipeline_mode = #tpu.pipeline_mode<synchronous>, transform_indices = @transform_2, window_bounds = array<i64: 2, 32>}, {transform_indices = @transform_3, window_bounds = array<i64: 1, 32, 96>}, {transform_indices = @transform_4, window_bounds = array<i64: 1, 1, 96>}, {transform_indices = @transform_5, window_bounds = array<i64: 1, 32, 32>}, {transform_indices = @transform_6, window_bounds = array<i64: 1, 1, 32>}, {transform_indices = @transform_7, window_bounds = array<i64: 1, 32, 64>}, {transform_indices = @transform_8, window_bounds = array<i64: 1, 1, 64>}, {transform_indices = @transform_9, window_bounds = array<i64: 1, 64, 32>}, {transform_indices = @transform_10, window_bounds = array<i64: 1, 1, 32>}, {transform_indices = @transform_11, window_bounds = array<i64: 1, 2, 32>}, {transform_indices = @transform_12, window_bounds = array<i64: 1, 2, 32>}, {pipeline_mode = #tpu.pipeline_mode<synchronous>, transform_indices = @transform_13, window_bounds = array<i64: 32, 64>}, {pipeline_mode = #tpu.pipeline_mode<synchronous>, transform_indices = @transform_14, window_bounds = array<i64: 1, 64>}, {transform_indices = @transform_15, window_bounds = array<i64: 1, 1, 64>}, {transform_indices = @transform_16, window_bounds = array<i64: 1, 1, 32>}]} {
    %c0_i32 = arith.constant 0 : i32
    %0 = arith.cmpi eq, %arg1, %c0_i32 : i32
    %1 = arith.extui %0 : i1 to i32
    %c0_i32_0 = arith.constant 0 : i32
    %2 = arith.cmpi ne, %1, %c0_i32_0 : i32
    scf.if %2 {
      %c0_70 = arith.constant 0 : index
      %c0_71 = arith.constant 0 : index
      %c0_72 = arith.constant 0 : index
      %159 = vector.load %arg2[%c0_70, %c0_71, %c0_72] : memref<1x8x32xf32, #tpu.memory_space<vmem>>, vector<1x8x32xf32>
      %160 = vector.shape_cast %159 : vector<1x8x32xf32> to vector<8x32xf32>
      %c0_73 = arith.constant 0 : index
      %c0_74 = arith.constant 0 : index
      %161 = vector.load %arg4[%c0_73, %c0_74] : memref<2x32xf32, #tpu.memory_space<vmem>>, vector<1x32xf32>
      %c1_75 = arith.constant 1 : index
      %c0_76 = arith.constant 0 : index
      %162 = vector.load %arg4[%c1_75, %c0_76] : memref<2x32xf32, #tpu.memory_space<vmem>>, vector<1x32xf32>
      %cst_77 = arith.constant dense<0.000000e+00> : vector<8xf32>
      %163 = vector.multi_reduction <add>, %160, %cst_77 [1] : vector<8x32xf32> to vector<8xf32>
      %164 = vector.shape_cast %163 : vector<8xf32> to vector<8x1xf32>
      %cst_78 = arith.constant 3.200000e+01 : f32
      %165 = vector.broadcast %cst_78 : f32 to vector<8x1xf32>
      %166 = arith.divf %164, %165 : vector<8x1xf32>
      %167 = vector.broadcast %166 : vector<8x1xf32> to vector<8x32xf32>
      %168 = arith.subf %160, %167 : vector<8x32xf32>
      %169 = arith.mulf %168, %168 : vector<8x32xf32>
      %cst_79 = arith.constant dense<0.000000e+00> : vector<8xf32>
      %170 = vector.multi_reduction <add>, %169, %cst_79 [1] : vector<8x32xf32> to vector<8xf32>
      %171 = vector.shape_cast %170 : vector<8xf32> to vector<8x1xf32>
      %cst_80 = arith.constant 3.200000e+01 : f32
      %172 = vector.broadcast %cst_80 : f32 to vector<8x1xf32>
      %173 = arith.divf %171, %172 : vector<8x1xf32>
      %174 = vector.broadcast %166 : vector<8x1xf32> to vector<8x32xf32>
      %175 = arith.subf %160, %174 : vector<8x32xf32>
      %cst_81 = arith.constant 9.99999996E-13 : f32
      %176 = vector.broadcast %cst_81 : f32 to vector<8x1xf32>
      %177 = arith.addf %173, %176 : vector<8x1xf32>
      %178 = math.rsqrt %177 : vector<8x1xf32>
      %179 = vector.broadcast %178 : vector<8x1xf32> to vector<8x32xf32>
      %180 = arith.mulf %175, %179 : vector<8x32xf32>
      %181 = vector.broadcast %161 : vector<1x32xf32> to vector<8x32xf32>
      %182 = arith.mulf %180, %181 : vector<8x32xf32>
      %183 = vector.broadcast %162 : vector<1x32xf32> to vector<8x32xf32>
      %184 = arith.addf %182, %183 : vector<8x32xf32>
      %c0_82 = arith.constant 0 : index
      %c0_83 = arith.constant 0 : index
      %185 = vector.load %arg19[%c0_82, %c0_83] : memref<8x32xf32, #tpu.memory_space<vmem>>, vector<8x32xf32>
      tpu.vector_store %arg19[%c0_82, %c0_83], %184 {strides = array<i32>} : memref<8x32xf32, #tpu.memory_space<vmem>>, vector<8x32xf32>,
    } else {
    }
    %c0 = arith.constant 0 : index
    %c0_1 = arith.constant 0 : index
    %3 = vector.load %arg19[%c0, %c0_1] : memref<8x32xf32, #tpu.memory_space<vmem>>, vector<8x32xf32>
    %4 = arith.truncf %3 : vector<8x32xf32> to vector<8x32xbf16>
    %c0_2 = arith.constant 0 : index
    %c0_3 = arith.constant 0 : index
    %c0_4 = arith.constant 0 : index
    %5 = vector.load %arg5[%c0_2, %c0_3, %c0_4] : memref<1x32x96xbf16, #tpu.memory_space<vmem>>, vector<1x32x96xbf16>
    %6 = vector.shape_cast %5 : vector<1x32x96xbf16> to vector<32x96xbf16>
    %cst = arith.constant dense<0.000000e+00> : vector<8x96xf32>
    %7 = tpu.matmul %4, %6, %cst {dimension_numbers = #tpu.dot_dimension_numbers<[1], [0], [0], [1], [0, 0, 1, 1], [], []>} : vector<8x32xbf16>, vector<32x96xbf16>, vector<8x96xf32> -> vector<8x96xf32>
    %c0_5 = arith.constant 0 : index
    %c0_6 = arith.constant 0 : index
    %c0_7 = arith.constant 0 : index
    %8 = vector.load %arg6[%c0_5, %c0_6, %c0_7] : memref<1x1x96xf32, #tpu.memory_space<vmem>>, vector<1x1x96xf32>
    %9 = vector.shape_cast %8 : vector<1x1x96xf32> to vector<1x96xf32>
    %10 = vector.broadcast %9 : vector<1x96xf32> to vector<8x96xf32>
    %11 = arith.addf %7, %10 : vector<8x96xf32>
    %12 = vector.extract_strided_slice %11 {offsets = [0, 0], sizes = [8, 32], strides = [1, 1]} : vector<8x96xf32> to vector<8x32xf32>
    %13 = vector.extract_strided_slice %11 {offsets = [0, 32], sizes = [8, 32], strides = [1, 1]} : vector<8x96xf32> to vector<8x32xf32>
    %14 = vector.extract_strided_slice %11 {offsets = [0, 64], sizes = [8, 32], strides = [1, 1]} : vector<8x96xf32> to vector<8x32xf32>
    %c0_8 = arith.constant 0 : index
    %c0_9 = arith.constant 0 : index
    %c0_10 = arith.constant 0 : index
    %15 = vector.load %arg3[%c0_8, %c0_9, %c0_10] : memref<1x1x8xf32, #tpu.memory_space<vmem>>, vector<1x1x8xf32>
    %16 = vector.shape_cast %15 : vector<1x1x8xf32> to vector<1x8xf32>
    %17 = vector.extract_strided_slice %12 {offsets = [0, 0], sizes = [8, 16], strides = [1, 1]} : vector<8x32xf32> to vector<8x16xf32>
    %cst_11 = arith.constant 2.500000e-01 : f32
    %18 = vector.broadcast %cst_11 : f32 to vector<8x16xf32>
    %19 = arith.mulf %17, %18 : vector<8x16xf32>
    %20 = arith.truncf %19 : vector<8x16xf32> to vector<8x16xbf16>
    %21 = vector.extract_strided_slice %13 {offsets = [0, 0], sizes = [8, 16], strides = [1, 1]} : vector<8x32xf32> to vector<8x16xf32>
    %22 = arith.truncf %21 : vector<8x16xf32> to vector<8x16xbf16>
    %23 = vector.extract_strided_slice %14 {offsets = [0, 0], sizes = [8, 16], strides = [1, 1]} : vector<8x32xf32> to vector<8x16xf32>
    %24 = arith.truncf %23 : vector<8x16xf32> to vector<8x16xbf16>
    %cst_12 = arith.constant dense<0.000000e+00> : vector<8x8xf32>
    %25 = tpu.matmul %20, %22, %cst_12 {dimension_numbers = #tpu.dot_dimension_numbers<[1], [1], [0], [0], [0, 0, 1, 0], [], []>} : vector<8x16xbf16>, vector<8x16xbf16>, vector<8x8xf32> -> vector<8x8xf32>
    %26 = vector.broadcast %16 : vector<1x8xf32> to vector<8x8xf32>
    %27 = arith.addf %25, %26 : vector<8x8xf32>
    %cst_13 = arith.constant dense<0xFF800000> : vector<8xf32>
    %28 = vector.multi_reduction <maximumf>, %27, %cst_13 [1] : vector<8x8xf32> to vector<8xf32>
    %29 = vector.shape_cast %28 : vector<8xf32> to vector<8x1xf32>
    %30 = vector.broadcast %29 : vector<8x1xf32> to vector<8x8xf32>
    %31 = arith.subf %27, %30 : vector<8x8xf32>
    %32 = math.exp %31 : vector<8x8xf32>
    %cst_14 = arith.constant dense<0.000000e+00> : vector<8xf32>
    %33 = vector.multi_reduction <add>, %32, %cst_14 [1] : vector<8x8xf32> to vector<8xf32>
    %34 = vector.shape_cast %33 : vector<8xf32> to vector<8x1xf32>
    %35 = tpu.reciprocal %34 {approx = true} : vector<8x1xf32> -> vector<8x1xf32>
    %36 = vector.broadcast %35 : vector<8x1xf32> to vector<8x8xf32>
    %37 = arith.mulf %32, %36 : vector<8x8xf32>
    %38 = arith.truncf %37 : vector<8x8xf32> to vector<8x8xbf16>
    %cst_15 = arith.constant dense<0.000000e+00> : vector<8x16xf32>
    %39 = tpu.matmul %38, %24, %cst_15 {dimension_numbers = #tpu.dot_dimension_numbers<[1], [0], [0], [1], [0, 0, 1, 1], [], []>} : vector<8x8xbf16>, vector<8x16xbf16>, vector<8x16xf32> -> vector<8x16xf32>
    %40 = vector.extract_strided_slice %12 {offsets = [0, 16], sizes = [8, 16], strides = [1, 1]} : vector<8x32xf32> to vector<8x16xf32>
    %cst_16 = arith.constant 2.500000e-01 : f32
    %41 = vector.broadcast %cst_16 : f32 to vector<8x16xf32>
    %42 = arith.mulf %40, %41 : vector<8x16xf32>
    %43 = arith.truncf %42 : vector<8x16xf32> to vector<8x16xbf16>
    %44 = vector.extract_strided_slice %13 {offsets = [0, 16], sizes = [8, 16], strides = [1, 1]} : vector<8x32xf32> to vector<8x16xf32>
    %45 = arith.truncf %44 : vector<8x16xf32> to vector<8x16xbf16>
    %46 = vector.extract_strided_slice %14 {offsets = [0, 16], sizes = [8, 16], strides = [1, 1]} : vector<8x32xf32> to vector<8x16xf32>
    %47 = arith.truncf %46 : vector<8x16xf32> to vector<8x16xbf16>
    %cst_17 = arith.constant dense<0.000000e+00> : vector<8x8xf32>
    %48 = tpu.matmul %43, %45, %cst_17 {dimension_numbers = #tpu.dot_dimension_numbers<[1], [1], [0], [0], [0, 0, 1, 0], [], []>} : vector<8x16xbf16>, vector<8x16xbf16>, vector<8x8xf32> -> vector<8x8xf32>
    %49 = vector.broadcast %16 : vector<1x8xf32> to vector<8x8xf32>
    %50 = arith.addf %48, %49 : vector<8x8xf32>
    %cst_18 = arith.constant dense<0xFF800000> : vector<8xf32>
    %51 = vector.multi_reduction <maximumf>, %50, %cst_18 [1] : vector<8x8xf32> to vector<8xf32>
    %52 = vector.shape_cast %51 : vector<8xf32> to vector<8x1xf32>
    %53 = vector.broadcast %52 : vector<8x1xf32> to vector<8x8xf32>
    %54 = arith.subf %50, %53 : vector<8x8xf32>
    %55 = math.exp %54 : vector<8x8xf32>
    %cst_19 = arith.constant dense<0.000000e+00> : vector<8xf32>
    %56 = vector.multi_reduction <add>, %55, %cst_19 [1] : vector<8x8xf32> to vector<8xf32>
    %57 = vector.shape_cast %56 : vector<8xf32> to vector<8x1xf32>
    %58 = tpu.reciprocal %57 {approx = true} : vector<8x1xf32> -> vector<8x1xf32>
    %59 = vector.broadcast %58 : vector<8x1xf32> to vector<8x8xf32>
    %60 = arith.mulf %55, %59 : vector<8x8xf32>
    %61 = arith.truncf %60 : vector<8x8xf32> to vector<8x8xbf16>
    %cst_20 = arith.constant dense<0.000000e+00> : vector<8x16xf32>
    %62 = tpu.matmul %61, %47, %cst_20 {dimension_numbers = #tpu.dot_dimension_numbers<[1], [0], [0], [1], [0, 0, 1, 1], [], []>} : vector<8x8xbf16>, vector<8x16xbf16>, vector<8x16xf32> -> vector<8x16xf32>
    %63 = tpu.concatenate %39, %62 in 1 : vector<8x16xf32>, vector<8x16xf32> -> vector<8x32xf32>
    %64 = arith.truncf %63 : vector<8x32xf32> to vector<8x32xbf16>
    %c0_21 = arith.constant 0 : index
    %c0_22 = arith.constant 0 : index
    %c0_23 = arith.constant 0 : index
    %65 = vector.load %arg7[%c0_21, %c0_22, %c0_23] : memref<1x32x32xbf16, #tpu.memory_space<vmem>>, vector<1x32x32xbf16>
    %66 = vector.shape_cast %65 : vector<1x32x32xbf16> to vector<32x32xbf16>
    %cst_24 = arith.constant dense<0.000000e+00> : vector<8x32xf32>
    %67 = tpu.matmul %64, %66, %cst_24 {dimension_numbers = #tpu.dot_dimension_numbers<[1], [0], [0], [1], [0, 0, 1, 1], [], []>} : vector<8x32xbf16>, vector<32x32xbf16>, vector<8x32xf32> -> vector<8x32xf32>
    %c0_25 = arith.constant 0 : index
    %c0_26 = arith.constant 0 : index
    %c0_27 = arith.constant 0 : index
    %68 = vector.load %arg8[%c0_25, %c0_26, %c0_27] : memref<1x1x32xf32, #tpu.memory_space<vmem>>, vector<1x1x32xf32>
    %69 = vector.shape_cast %68 : vector<1x1x32xf32> to vector<1x32xf32>
    %70 = vector.broadcast %69 : vector<1x32xf32> to vector<8x32xf32>
    %71 = arith.addf %67, %70 : vector<8x32xf32>
    %72 = arith.addf %71, %3 : vector<8x32xf32>
    %c0_28 = arith.constant 0 : index
    %c0_29 = arith.constant 0 : index
    %c0_30 = arith.constant 0 : index
    %73 = vector.load %arg13[%c0_28, %c0_29, %c0_30] : memref<1x2x32xf32, #tpu.memory_space<vmem>>, vector<1x1x32xf32>
    %74 = vector.shape_cast %73 : vector<1x1x32xf32> to vector<1x32xf32>
    %c0_31 = arith.constant 0 : index
    %c1 = arith.constant 1 : index
    %c0_32 = arith.constant 0 : index
    %75 = vector.load %arg13[%c0_31, %c1, %c0_32] : memref<1x2x32xf32, #tpu.memory_space<vmem>>, vector<1x1x32xf32>
    %76 = vector.shape_cast %75 : vector<1x1x32xf32> to vector<1x32xf32>
    %cst_33 = arith.constant dense<0.000000e+00> : vector<8xf32>
    %77 = vector.multi_reduction <add>, %72, %cst_33 [1] : vector<8x32xf32> to vector<8xf32>
    %78 = vector.shape_cast %77 : vector<8xf32> to vector<8x1xf32>
    %cst_34 = arith.constant 3.200000e+01 : f32
    %79 = vector.broadcast %cst_34 : f32 to vector<8x1xf32>
    %80 = arith.divf %78, %79 : vector<8x1xf32>
    %81 = vector.broadcast %80 : vector<8x1xf32> to vector<8x32xf32>
    %82 = arith.subf %72, %81 : vector<8x32xf32>
    %83 = arith.mulf %82, %82 : vector<8x32xf32>
    %cst_35 = arith.constant dense<0.000000e+00> : vector<8xf32>
    %84 = vector.multi_reduction <add>, %83, %cst_35 [1] : vector<8x32xf32> to vector<8xf32>
    %85 = vector.shape_cast %84 : vector<8xf32> to vector<8x1xf32>
    %cst_36 = arith.constant 3.200000e+01 : f32
    %86 = vector.broadcast %cst_36 : f32 to vector<8x1xf32>
    %87 = arith.divf %85, %86 : vector<8x1xf32>
    %88 = vector.broadcast %80 : vector<8x1xf32> to vector<8x32xf32>
    %89 = arith.subf %72, %88 : vector<8x32xf32>
    %cst_37 = arith.constant 9.99999996E-13 : f32
    %90 = vector.broadcast %cst_37 : f32 to vector<8x1xf32>
    %91 = arith.addf %87, %90 : vector<8x1xf32>
    %92 = math.rsqrt %91 : vector<8x1xf32>
    %93 = vector.broadcast %92 : vector<8x1xf32> to vector<8x32xf32>
    %94 = arith.mulf %89, %93 : vector<8x32xf32>
    %95 = vector.broadcast %74 : vector<1x32xf32> to vector<8x32xf32>
    %96 = arith.mulf %94, %95 : vector<8x32xf32>
    %97 = vector.broadcast %76 : vector<1x32xf32> to vector<8x32xf32>
    %98 = arith.addf %96, %97 : vector<8x32xf32>
    %99 = arith.truncf %98 : vector<8x32xf32> to vector<8x32xbf16>
    %c0_38 = arith.constant 0 : index
    %c0_39 = arith.constant 0 : index
    %c0_40 = arith.constant 0 : index
    %100 = vector.load %arg9[%c0_38, %c0_39, %c0_40] : memref<1x32x64xbf16, #tpu.memory_space<vmem>>, vector<1x32x64xbf16>
    %101 = vector.shape_cast %100 : vector<1x32x64xbf16> to vector<32x64xbf16>
    %cst_41 = arith.constant dense<0.000000e+00> : vector<8x64xf32>
    %102 = tpu.matmul %99, %101, %cst_41 {dimension_numbers = #tpu.dot_dimension_numbers<[1], [0], [0], [1], [0, 0, 1, 1], [], []>} : vector<8x32xbf16>, vector<32x64xbf16>, vector<8x64xf32> -> vector<8x64xf32>
    %c0_42 = arith.constant 0 : index
    %c0_43 = arith.constant 0 : index
    %c0_44 = arith.constant 0 : index
    %103 = vector.load %arg10[%c0_42, %c0_43, %c0_44] : memref<1x1x64xf32, #tpu.memory_space<vmem>>, vector<1x1x64xf32>
    %104 = vector.shape_cast %103 : vector<1x1x64xf32> to vector<1x64xf32>
    %105 = vector.broadcast %104 : vector<1x64xf32> to vector<8x64xf32>
    %106 = arith.addf %102, %105 : vector<8x64xf32>
    %107 = arith.mulf %106, %106 : vector<8x64xf32>
    %108 = arith.mulf %106, %107 : vector<8x64xf32>
    %cst_45 = arith.constant 4.471500e-02 : f32
    %109 = vector.broadcast %cst_45 : f32 to vector<8x64xf32>
    %110 = arith.mulf %109, %108 : vector<8x64xf32>
    %111 = arith.addf %106, %110 : vector<8x64xf32>
    %cst_46 = arith.constant 0.797884583 : f32
    %112 = vector.broadcast %cst_46 : f32 to vector<8x64xf32>
    %113 = arith.mulf %112, %111 : vector<8x64xf32>
    %114 = math.tanh %113 : vector<8x64xf32>
    %cst_47 = arith.constant 1.000000e+00 : f32
    %115 = vector.broadcast %cst_47 : f32 to vector<8x64xf32>
    %116 = arith.addf %115, %114 : vector<8x64xf32>
    %cst_48 = arith.constant 5.000000e-01 : f32
    %117 = vector.broadcast %cst_48 : f32 to vector<8x64xf32>
    %118 = arith.mulf %117, %116 : vector<8x64xf32>
    %119 = arith.mulf %106, %118 : vector<8x64xf32>
    %120 = arith.truncf %119 : vector<8x64xf32> to vector<8x64xbf16>
    %c0_49 = arith.constant 0 : index
    %c0_50 = arith.constant 0 : index
    %c0_51 = arith.constant 0 : index
    %121 = vector.load %arg11[%c0_49, %c0_50, %c0_51] : memref<1x64x32xbf16, #tpu.memory_space<vmem>>, vector<1x64x32xbf16>
    %122 = vector.shape_cast %121 : vector<1x64x32xbf16> to vector<64x32xbf16>
    %cst_52 = arith.constant dense<0.000000e+00> : vector<8x32xf32>
    %123 = tpu.matmul %120, %122, %cst_52 {dimension_numbers = #tpu.dot_dimension_numbers<[1], [0], [0], [1], [0, 0, 1, 1], [], []>} : vector<8x64xbf16>, vector<64x32xbf16>, vector<8x32xf32> -> vector<8x32xf32>
    %c0_53 = arith.constant 0 : index
    %c0_54 = arith.constant 0 : index
    %c0_55 = arith.constant 0 : index
    %124 = vector.load %arg12[%c0_53, %c0_54, %c0_55] : memref<1x1x32xf32, #tpu.memory_space<vmem>>, vector<1x1x32xf32>
    %125 = vector.shape_cast %124 : vector<1x1x32xf32> to vector<1x32xf32>
    %126 = vector.broadcast %125 : vector<1x32xf32> to vector<8x32xf32>
    %127 = arith.addf %123, %126 : vector<8x32xf32>
    %128 = arith.addf %127, %98 : vector<8x32xf32>
    %c0_56 = arith.constant 0 : index
    %c0_57 = arith.constant 0 : index
    %c0_58 = arith.constant 0 : index
    %129 = vector.load %arg14[%c0_56, %c0_57, %c0_58] : memref<1x2x32xf32, #tpu.memory_space<vmem>>, vector<1x1x32xf32>
    %130 = vector.shape_cast %129 : vector<1x1x32xf32> to vector<1x32xf32>
    %c0_59 = arith.constant 0 : index
    %c1_60 = arith.constant 1 : index
    %c0_61 = arith.constant 0 : index
    %131 = vector.load %arg14[%c0_59, %c1_60, %c0_61] : memref<1x2x32xf32, #tpu.memory_space<vmem>>, vector<1x1x32xf32>
    %132 = vector.shape_cast %131 : vector<1x1x32xf32> to vector<1x32xf32>
    %cst_62 = arith.constant dense<0.000000e+00> : vector<8xf32>
    %133 = vector.multi_reduction <add>, %128, %cst_62 [1] : vector<8x32xf32> to vector<8xf32>
    %134 = vector.shape_cast %133 : vector<8xf32> to vector<8x1xf32>
    %cst_63 = arith.constant 3.200000e+01 : f32
    %135 = vector.broadcast %cst_63 : f32 to vector<8x1xf32>
    %136 = arith.divf %134, %135 : vector<8x1xf32>
    %137 = vector.broadcast %136 : vector<8x1xf32> to vector<8x32xf32>
    %138 = arith.subf %128, %137 : vector<8x32xf32>
    %139 = arith.mulf %138, %138 : vector<8x32xf32>
    %cst_64 = arith.constant dense<0.000000e+00> : vector<8xf32>
    %140 = vector.multi_reduction <add>, %139, %cst_64 [1] : vector<8x32xf32> to vector<8xf32>
    %141 = vector.shape_cast %140 : vector<8xf32> to vector<8x1xf32>
    %cst_65 = arith.constant 3.200000e+01 : f32
    %142 = vector.broadcast %cst_65 : f32 to vector<8x1xf32>
    %143 = arith.divf %141, %142 : vector<8x1xf32>
    %144 = vector.broadcast %136 : vector<8x1xf32> to vector<8x32xf32>
    %145 = arith.subf %128, %144 : vector<8x32xf32>
    %cst_66 = arith.constant 9.99999996E-13 : f32
    %146 = vector.broadcast %cst_66 : f32 to vector<8x1xf32>
    %147 = arith.addf %143, %146 : vector<8x1xf32>
    %148 = math.rsqrt %147 : vector<8x1xf32>
    %149 = vector.broadcast %148 : vector<8x1xf32> to vector<8x32xf32>
    %150 = arith.mulf %145, %149 : vector<8x32xf32>
    %151 = vector.broadcast %130 : vector<1x32xf32> to vector<8x32xf32>
    %152 = arith.mulf %150, %151 : vector<8x32xf32>
    %153 = vector.broadcast %132 : vector<1x32xf32> to vector<8x32xf32>
    %154 = arith.addf %152, %153 : vector<8x32xf32>
    %c0_67 = arith.constant 0 : index
    %c0_68 = arith.constant 0 : index
    %155 = vector.load %arg19[%c0_67, %c0_68] : memref<8x32xf32, #tpu.memory_space<vmem>>, vector<8x32xf32>
    tpu.vector_store %arg19[%c0_67, %c0_68], %154 {strides = array<i32>} : memref<8x32xf32, #tpu.memory_space<vmem>>, vector<8x32xf32>,
    %c1_i32 = arith.constant 1 : i32
    %156 = arith.cmpi eq, %arg1, %c1_i32 : i32
    %157 = arith.extui %156 : i1 to i32
    %c0_i32_69 = arith.constant 0 : i32
    %158 = arith.cmpi ne, %157, %c0_i32_69 : i32
    scf.if %158 {
      %159 = vector.extract_strided_slice %154 {offsets = [0, 0], sizes = [1, 32], strides = [1, 1]} : vector<8x32xf32> to vector<1x32xf32>
      %c0_70 = arith.constant 0 : index
      %c0_71 = arith.constant 0 : index
      %c0_72 = arith.constant 0 : index
      %160 = vector.load %arg18[%c0_70, %c0_71, %c0_72] : memref<1x1x32xf32, #tpu.memory_space<vmem>>, vector<1x1x32xf32>
      %161 = vector.shape_cast %160 : vector<1x1x32xf32> to vector<1x32xf32>
      %162 = vector.shape_cast %159 : vector<1x32xf32> to vector<1x1x32xf32>
      tpu.vector_store %arg18[%c0_70, %c0_71, %c0_72], %162 {strides = array<i32>} : memref<1x1x32xf32, #tpu.memory_space<vmem>>, vector<1x1x32xf32>,
      %cst_73 = arith.constant 0.000000e+00 : f32
      %163 = vector.broadcast %cst_73 : f32 to vector<1x32xf32>
      %164 = arith.maximumf %159, %163 : vector<1x32xf32>
      %165 = arith.truncf %164 : vector<1x32xf32> to vector<1x32xbf16>
      %c0_74 = arith.constant 0 : index
      %c0_75 = arith.constant 0 : index
      %166 = vector.load %arg15[%c0_74, %c0_75] : memref<32x64xbf16, #tpu.memory_space<vmem>>, vector<32x64xbf16>
      %cst_76 = arith.constant dense<0.000000e+00> : vector<1x64xf32>
      %167 = tpu.matmul %165, %166, %cst_76 {dimension_numbers = #tpu.dot_dimension_numbers<[1], [0], [0], [1], [0, 0, 1, 1], [], []>} : vector<1x32xbf16>, vector<32x64xbf16>, vector<1x64xf32> -> vector<1x64xf32>
      %c0_77 = arith.constant 0 : index
      %c0_78 = arith.constant 0 : index
      %168 = vector.load %arg16[%c0_77, %c0_78] : memref<1x64xf32, #tpu.memory_space<vmem>>, vector<1x64xf32>
      %169 = arith.addf %167, %168 : vector<1x64xf32>
      %170 = arith.negf %169 : vector<1x64xf32>
      %171 = math.exp %170 : vector<1x64xf32>
      %cst_79 = arith.constant 1.000000e+00 : f32
      %172 = vector.broadcast %cst_79 : f32 to vector<1x64xf32>
      %173 = arith.addf %172, %171 : vector<1x64xf32>
      %174 = arith.divf %172, %173 : vector<1x64xf32>
      %c0_80 = arith.constant 0 : index
      %c0_81 = arith.constant 0 : index
      %c0_82 = arith.constant 0 : index
      %175 = vector.load %arg17[%c0_80, %c0_81, %c0_82] : memref<1x1x64xf32, #tpu.memory_space<vmem>>, vector<1x1x64xf32>
      %176 = vector.shape_cast %175 : vector<1x1x64xf32> to vector<1x64xf32>
      %177 = vector.shape_cast %174 : vector<1x64xf32> to vector<1x1x64xf32>
      tpu.vector_store %arg17[%c0_80, %c0_81, %c0_82], %177 {strides = array<i32>} : memref<1x1x64xf32, #tpu.memory_space<vmem>>, vector<1x1x64xf32>,
    } else {
    }
    return
  }
  func.func @transform_0(%arg0: i32, %arg1: i32) -> (i32, i32, i32) {
    %c0_i32 = arith.constant 0 : i32
    %c0_i32_0 = arith.constant 0 : i32
    %c0_i32_1 = arith.constant 0 : i32
    return %arg0, %c0_i32, %c0_i32_0 : i32, i32, i32
  }
  func.func @transform_1(%arg0: i32, %arg1: i32) -> (i32, i32, i32) {
    %c0_i32 = arith.constant 0 : i32
    %c0_i32_0 = arith.constant 0 : i32
    %c0_i32_1 = arith.constant 0 : i32
    return %arg0, %c0_i32, %c0_i32_0 : i32, i32, i32
  }
  func.func @transform_2(%arg0: i32, %arg1: i32) -> (i32, i32) {
    %c0_i32 = arith.constant 0 : i32
    %c0_i32_0 = arith.constant 0 : i32
    %c0_i32_1 = arith.constant 0 : i32
    return %c0_i32, %c0_i32_0 : i32, i32
  }
  func.func @transform_3(%arg0: i32, %arg1: i32) -> (i32, i32, i32) {
    %c0_i32 = arith.constant 0 : i32
    %c0_i32_0 = arith.constant 0 : i32
    %c0_i32_1 = arith.constant 0 : i32
    return %arg1, %c0_i32, %c0_i32_0 : i32, i32, i32
  }
  func.func @transform_4(%arg0: i32, %arg1: i32) -> (i32, i32, i32) {
    %c0_i32 = arith.constant 0 : i32
    %c0_i32_0 = arith.constant 0 : i32
    %c0_i32_1 = arith.constant 0 : i32
    return %arg1, %c0_i32, %c0_i32_0 : i32, i32, i32
  }
  func.func @transform_5(%arg0: i32, %arg1: i32) -> (i32, i32, i32) {
    %c0_i32 = arith.constant 0 : i32
    %c0_i32_0 = arith.constant 0 : i32
    %c0_i32_1 = arith.constant 0 : i32
    return %arg1, %c0_i32, %c0_i32_0 : i32, i32, i32
  }
  func.func @transform_6(%arg0: i32, %arg1: i32) -> (i32, i32, i32) {
    %c0_i32 = arith.constant 0 : i32
    %c0_i32_0 = arith.constant 0 : i32
    %c0_i32_1 = arith.constant 0 : i32
    return %arg1, %c0_i32, %c0_i32_0 : i32, i32, i32
  }
  func.func @transform_7(%arg0: i32, %arg1: i32) -> (i32, i32, i32) {
    %c0_i32 = arith.constant 0 : i32
    %c0_i32_0 = arith.constant 0 : i32
    %c0_i32_1 = arith.constant 0 : i32
    return %arg1, %c0_i32, %c0_i32_0 : i32, i32, i32
  }
  func.func @transform_8(%arg0: i32, %arg1: i32) -> (i32, i32, i32) {
    %c0_i32 = arith.constant 0 : i32
    %c0_i32_0 = arith.constant 0 : i32
    %c0_i32_1 = arith.constant 0 : i32
    return %arg1, %c0_i32, %c0_i32_0 : i32, i32, i32
  }
  func.func @transform_9(%arg0: i32, %arg1: i32) -> (i32, i32, i32) {
    %c0_i32 = arith.constant 0 : i32
    %c0_i32_0 = arith.constant 0 : i32
    %c0_i32_1 = arith.constant 0 : i32
    return %arg1, %c0_i32, %c0_i32_0 : i32, i32, i32
  }
  func.func @transform_10(%arg0: i32, %arg1: i32) -> (i32, i32, i32) {
    %c0_i32 = arith.constant 0 : i32
    %c0_i32_0 = arith.constant 0 : i32
    %c0_i32_1 = arith.constant 0 : i32
    return %arg1, %c0_i32, %c0_i32_0 : i32, i32, i32
  }
  func.func @transform_11(%arg0: i32, %arg1: i32) -> (i32, i32, i32) {
    %c0_i32 = arith.constant 0 : i32
    %c0_i32_0 = arith.constant 0 : i32
    %c0_i32_1 = arith.constant 0 : i32
    return %arg1, %c0_i32, %c0_i32_0 : i32, i32, i32
  }
  func.func @transform_12(%arg0: i32, %arg1: i32) -> (i32, i32, i32) {
    %c0_i32 = arith.constant 0 : i32
    %c0_i32_0 = arith.constant 0 : i32
    %c0_i32_1 = arith.constant 0 : i32
    return %arg1, %c0_i32, %c0_i32_0 : i32, i32, i32
  }
  func.func @transform_13(%arg0: i32, %arg1: i32) -> (i32, i32) {
    %c0_i32 = arith.constant 0 : i32
    %c0_i32_0 = arith.constant 0 : i32
    %c0_i32_1 = arith.constant 0 : i32
    return %c0_i32, %c0_i32_0 : i32, i32
  }
  func.func @transform_14(%arg0: i32, %arg1: i32) -> (i32, i32) {
    %c0_i32 = arith.constant 0 : i32
    %c0_i32_0 = arith.constant 0 : i32
    %c0_i32_1 = arith.constant 0 : i32
    return %c0_i32, %c0_i32_0 : i32, i32
  }
  func.func @transform_15(%arg0: i32, %arg1: i32) -> (i32, i32, i32) {
    %c0_i32 = arith.constant 0 : i32
    %c0_i32_0 = arith.constant 0 : i32
    %c0_i32_1 = arith.constant 0 : i32
    return %arg0, %c0_i32, %c0_i32_0 : i32, i32, i32
  }
  func.func @transform_16(%arg0: i32, %arg1: i32) -> (i32, i32, i32) {
    %c0_i32 = arith.constant 0 : i32
    %c0_i32_0 = arith.constant 0 : i32
    %c0_i32_1 = arith.constant 0 : i32
    return %arg0, %c0_i32, %c0_i32_0 : i32, i32, i32
  }
}

</mosaic_0001>

<llo_original>
// kernel: textnet_forward.1
$region0: #{textnet_forward.1}
  #allocation0 [shape = 'u32[]', space=smem, size = 0x4, offset = 0x4, fixed_abs, tag = 'smem constant byte address 0x4 - core index']
  #allocation1 [shape = 'u32[144,128]{1,0:T(1,128)}', space=vmem, size = 0x12000, scoped, tag = 'internal scratch']
  #allocation2 [shape = 'f32[8,32]{1,0:T(8,128)}', space=vmem, size = 0x1000, scoped, tag = 'scratch operand']
  %s0 = inlined_call_operand.vmem [shape: f32[2,8,32], index: 0, kind: input, shape index: {}]
  %s1 = inlined_call_operand.vmem [shape: f32[2,1,8], index: 1, kind: input, shape index: {}]
  %s2 = inlined_call_operand.vmem [shape: f32[2,32], index: 2, kind: input, shape index: {}]
  %s3 = inlined_call_operand.vmem [shape: bf16[2,32,96], index: 3, kind: input, shape index: {}]
  %s4 = inlined_call_operand.vmem [shape: f32[2,1,96], index: 4, kind: input, shape index: {}]
  %s5 = inlined_call_operand.vmem [shape: bf16[2,32,32], index: 5, kind: input, shape index: {}]
  %s6 = inlined_call_operand.vmem [shape: f32[2,1,32], index: 6, kind: input, shape index: {}]
  %s7 = inlined_call_operand.vmem [shape: bf16[2,32,64], index: 7, kind: input, shape index: {}]
  %s8 = inlined_call_operand.vmem [shape: f32[2,1,64], index: 8, kind: input, shape index: {}]
  %s9 = inlined_call_operand.vmem [shape: bf16[2,64,32], index: 9, kind: input, shape index: {}]
  %s10 = inlined_call_operand.vmem [shape: f32[2,1,32], index: 10, kind: input, shape index: {}]
  %s11 = inlined_call_operand.vmem [shape: f32[2,2,32], index: 11, kind: input, shape index: {}]
  %s12 = inlined_call_operand.vmem [shape: f32[2,2,32], index: 12, kind: input, shape index: {}]
  %s13 = inlined_call_operand.vmem [shape: bf16[32,64], index: 13, kind: input, shape index: {}]
  %s14 = inlined_call_operand.vmem [shape: f32[1,64], index: 14, kind: input, shape index: {}]
  %s15 = inlined_call_operand.hbm [shape: f32[2,1,64], index: 15, kind: output, shape index: {0}]
  %s16 = inlined_call_operand.hbm [shape: f32[2,1,32], index: 16, kind: output, shape index: {1}]
  %17 = xla_tuple %s15, %s16
  %s18 = sld [smem:[#allocation0]]
  $region109: #{textnet_forward.1} parent=0
    _
  %s20 = ssub.s32 1, %s18
  %s21 = scalar_select 0, %s20, %s18
  $region1: #{textnet_forward.1} parent=0
    #allocation3 [shape = 'u8[1024]{0}', space=vmem, size = 0x400, scoped, tag = 'output window, operand 0']
    #allocation4 [shape = 's32[2]{0}', space=sflag, size = 0x8, scoped, tag = 'scoped memory for textnet_forward.1']
    #allocation5 [shape = 'u8[1024]{0}', space=vmem, size = 0x400, scoped, tag = 'output window, operand 1']
    #allocation6 [shape = 's32[2]{0}', space=sflag, size = 0x8, scoped, tag = 'scoped memory for textnet_forward.1']
    %22 = vsyncpa [#allocation4], 0
    %s23 = scalar_lea.sflag [#allocation4], 1
    %24 = vsyncpa %s23, 0
    %25 = vsyncpa [#allocation6], 0
    %s26 = scalar_lea.sflag [#allocation6], 1
    %27 = vsyncpa %s26, 0
    loop: start=0, step=1, limit=6
    $region2: #{textnet_forward.1} parent=1 // loop_pre_header
      _
    $region3: #{textnet_forward.1} parent=1 // loop_header
      %s29 = sphi 0, %s33
      %p30 = scmp.ge.s32.totalorder %s29, 6
      %s36 = sphi 0, %s48
      %s37 = sphi 0, %s44
      %s38 = sphi 0, %s36
      %s39 = sphi 0, %s37
      %s40 = sphi 0, %s38
      %s41 = sphi 0, %s39
      %s51 = sphi 0, %s53
      %s54 = sphi 0, %s51
      %s55 = sphi 0, %s54
      %s71 = sphi 0, %s55
      %s77 = sphi 0, %s79
      %s80 = sphi 0, %s77
      %s81 = sphi 0, %s80
      %s97 = sphi 0, %s81
      %s101 = sphi 0, %s101
      %s103 = sphi 0, %s101
      %s104 = sphi 0, %s103
      %s118 = sphi 0, %s104
      %s124 = sphi 0, %s126
      %s127 = sphi 0, %s124
      %s128 = sphi 0, %s127
      %s144 = sphi 0, %s128
      %s150 = sphi 0, %s152
      %s153 = sphi 0, %s150
      %s154 = sphi 0, %s153
      %s170 = sphi 0, %s154
      %s176 = sphi 0, %s178
      %s179 = sphi 0, %s176
      %s180 = sphi 0, %s179
      %s196 = sphi 0, %s180
      %s202 = sphi 0, %s204
      %s205 = sphi 0, %s202
      %s206 = sphi 0, %s205
      %s222 = sphi 0, %s206
      %s228 = sphi 0, %s230
      %s231 = sphi 0, %s228
      %s232 = sphi 0, %s231
      %s248 = sphi 0, %s232
      %s254 = sphi 0, %s256
      %s257 = sphi 0, %s254
      %s258 = sphi 0, %s257
      %s274 = sphi 0, %s258
      %s280 = sphi 0, %s282
      %s283 = sphi 0, %s280
      %s284 = sphi 0, %s283
      %s300 = sphi 0, %s284
      %s306 = sphi 0, %s308
      %s309 = sphi 0, %s306
      %s310 = sphi 0, %s309
      %s326 = sphi 0, %s310
      %s332 = sphi 0, %s334
      %s335 = sphi 0, %s332
      %s336 = sphi 0, %s335
      %s352 = sphi 0, %s336
      %s358 = sphi 0, %s360
      %s361 = sphi 0, %s358
      %s362 = sphi 0, %s361
      %s378 = sphi 0, %s362
      %s382 = sphi 0, %s382
      %s384 = sphi 0, %s382
      %s385 = sphi 0, %s384
      %s399 = sphi 0, %s385
      %s403 = sphi 0, %s403
      %s405 = sphi 0, %s403
      %s406 = sphi 0, %s405
      %s420 = sphi 0, %s406
      %s426 = sphi 0, %s428
      %s429 = sphi 0, %s426
      %s430 = sphi 0, %s429
      %s446 = sphi 0, %s430
      %s452 = sphi 0, %s454
      %s455 = sphi 0, %s452
      %s456 = sphi 0, %s455
      %s472 = sphi 0, %s456
    $region4: #{textnet_forward.1} parent=1 // loop_header_branch
      %32 = sbr.rel (%p30) target = $region8
    $region5: #{textnet_forward.1} parent=1 // loop_body
      %s34 = ssub.s32 %s29, 1
      %s35 = ssub.s32 %s29, 2
      %s42 = sadd.s32 1, %s37
      %p43 = scmp.ge.s32.totalorder %s42, 2
      %s44 = scalar_select %p43, 0, %s42
      %s45 = sadd.s32 1, %s36
      %s46 = scalar_select %p43, %s45, %s36
      %p47 = scmp.ge.s32.totalorder %s46, 2
      %s48 = scalar_select %p47, 0, %s46
      %s49 = ssub.s32 %s36, %s48
      %p50 = scmp.eq.s32.totalorder %s49, 0
      %s52 = sadd.s32 %s51, 1
      %s53 = scalar_select %p50, %s51, %s52
      %p56 = pneg %p50
      %p57 = scmp.eq.s32.totalorder %s29, 3
      %p58 = por %p56, %p57
      %p59 = scmp.ne.s32.totalorder %s51, %s54
      %p60 = scmp.eq.s32.totalorder %s29, 0
      %p61 = por %p59, %p60
      %p62 = scmp.ne.s32.totalorder %s51, %s54
      %p63 = scmp.eq.s32.totalorder %s34, 3
      %p64 = por %p62, %p63
      %p65 = scmp.ne.s32.totalorder %s54, %s55
      %p66 = scmp.eq.s32.totalorder %s34, 0
      %p67 = por %p65, %p66
      %p68 = scmp.ne.s32.totalorder %s54, %s55
      %p69 = scmp.eq.s32.totalorder %s35, 3
      %p70 = por %p68, %p69
      %p72 = scmp.ne.s32.totalorder %s55, %s71
      %p73 = scmp.eq.s32.totalorder %s35, 0
      %p74 = por %p72, %p73
      %s75 = ssub.s32 %s36, %s48
      %p76 = scmp.eq.s32.totalorder %s75, 0
      %s78 = sadd.s32 %s77, 1
      %s79 = scalar_select %p76, %s77, %s78
      %p82 = pneg %p76
      %p83 = scmp.eq.s32.totalorder %s29, 3
      %p84 = por %p82, %p83
      %p85 = scmp.ne.s32.totalorder %s77, %s80
      %p86 = scmp.eq.s32.totalorder %s29, 0
      %p87 = por %p85, %p86
      %p88 = scmp.ne.s32.totalorder %s77, %s80
      %p89 = scmp.eq.s32.totalorder %s34, 3
      %p90 = por %p88, %p89
      %p91 = scmp.ne.s32.totalorder %s80, %s81
      %p92 = scmp.eq.s32.totalorder %s34, 0
      %p93 = por %p91, %p92
      %p94 = scmp.ne.s32.totalorder %s80, %s81
      %p95 = scmp.eq.s32.totalorder %s35, 3
      %p96 = por %p94, %p95
      %p98 = scmp.ne.s32.totalorder %s81, %s97
      %p99 = scmp.eq.s32.totalorder %s35, 0
      %p100 = por %p98, %p99
      %s102 = sadd.s32 %s101, 1
      %p105 = scmp.eq.s32.totalorder %s29, 3
      %p106 = scmp.ne.s32.totalorder %s101, %s103
      %p107 = scmp.eq.s32.totalorder %s29, 0
      %p108 = por %p106, %p107
      %p109 = scmp.ne.s32.totalorder %s101, %s103
      %p110 = scmp.eq.s32.totalorder %s34, 3
      %p111 = por %p109, %p110
      %p112 = scmp.ne.s32.totalorder %s103, %s104
      %p113 = scmp.eq.s32.totalorder %s34, 0
      %p114 = por %p112, %p113
      %p115 = scmp.ne.s32.totalorder %s103, %s104
      %p116 = scmp.eq.s32.totalorder %s35, 3
      %p117 = por %p115, %p116
      %p119 = scmp.ne.s32.totalorder %s104, %s118
      %p120 = scmp.eq.s32.totalorder %s35, 0
      %p121 = por %p119, %p120
      %s122 = ssub.s32 %s37, %s44
      %p123 = scmp.eq.s32.totalorder %s122, 0
      %s125 = sadd.s32 %s124, 1
      %s126 = scalar_select %p123, %s124, %s125
      %p129 = pneg %p123
      %p130 = scmp.eq.s32.totalorder %s29, 3
      %p131 = por %p129, %p130
      %p132 = scmp.ne.s32.totalorder %s124, %s127
      %p133 = scmp.eq.s32.totalorder %s29, 0
      %p134 = por %p132, %p133
      %p135 = scmp.ne.s32.totalorder %s124, %s127
      %p136 = scmp.eq.s32.totalorder %s34, 3
      %p137 = por %p135, %p136
      %p138 = scmp.ne.s32.totalorder %s127, %s128
      %p139 = scmp.eq.s32.totalorder %s34, 0
      %p140 = por %p138, %p139
      %p141 = scmp.ne.s32.totalorder %s127, %s128
      %p142 = scmp.eq.s32.totalorder %s35, 3
      %p143 = por %p141, %p142
      %p145 = scmp.ne.s32.totalorder %s128, %s144
      %p146 = scmp.eq.s32.totalorder %s35, 0
      %p147 = por %p145, %p146
      %s148 = ssub.s32 %s37, %s44
      %p149 = scmp.eq.s32.totalorder %s148, 0
      %s151 = sadd.s32 %s150, 1
      %s152 = scalar_select %p149, %s150, %s151
      %p155 = pneg %p149
      %p156 = scmp.eq.s32.totalorder %s29, 3
      %p157 = por %p155, %p156
      %p158 = scmp.ne.s32.totalorder %s150, %s153
      %p159 = scmp.eq.s32.totalorder %s29, 0
      %p160 = por %p158, %p159
      %p161 = scmp.ne.s32.totalorder %s150, %s153
      %p162 = scmp.eq.s32.totalorder %s34, 3
      %p163 = por %p161, %p162
      %p164 = scmp.ne.s32.totalorder %s153, %s154
      %p165 = scmp.eq.s32.totalorder %s34, 0
      %p166 = por %p164, %p165
      %p167 = scmp.ne.s32.totalorder %s153, %s154
      %p168 = scmp.eq.s32.totalorder %s35, 3
      %p169 = por %p167, %p168
      %p171 = scmp.ne.s32.totalorder %s154, %s170
      %p172 = scmp.eq.s32.totalorder %s35, 0
      %p173 = por %p171, %p172
      %s174 = ssub.s32 %s37, %s44
      %p175 = scmp.eq.s32.totalorder %s174, 0
      %s177 = sadd.s32 %s176, 1
      %s178 = scalar_select %p175, %s176, %s177
      %p181 = pneg %p175
      %p182 = scmp.eq.s32.totalorder %s29, 3
      %p183 = por %p181, %p182
      %p184 = scmp.ne.s32.totalorder %s176, %s179
      %p185 = scmp.eq.s32.totalorder %s29, 0
      %p186 = por %p184, %p185
      %p187 = scmp.ne.s32.totalorder %s176, %s179
      %p188 = scmp.eq.s32.totalorder %s34, 3
      %p189 = por %p187, %p188
      %p190 = scmp.ne.s32.totalorder %s179, %s180
      %p191 = scmp.eq.s32.totalorder %s34, 0
      %p192 = por %p190, %p191
      %p193 = scmp.ne.s32.totalorder %s179, %s180
      %p194 = scmp.eq.s32.totalorder %s35, 3
      %p195 = por %p193, %p194
      %p197 = scmp.ne.s32.totalorder %s180, %s196
      %p198 = scmp.eq.s32.totalorder %s35, 0
      %p199 = por %p197, %p198
      %s200 = ssub.s32 %s37, %s44
      %p201 = scmp.eq.s32.totalorder %s200, 0
      %s203 = sadd.s32 %s202, 1
      %s204 = scalar_select %p201, %s202, %s203
      %p207 = pneg %p201
      %p208 = scmp.eq.s32.totalorder %s29, 3
      %p209 = por %p207, %p208
      %p210 = scmp.ne.s32.totalorder %s202, %s205
      %p211 = scmp.eq.s32.totalorder %s29, 0
      %p212 = por %p210, %p211
      %p213 = scmp.ne.s32.totalorder %s202, %s205
      %p214 = scmp.eq.s32.totalorder %s34, 3
      %p215 = por %p213, %p214
      %p216 = scmp.ne.s32.totalorder %s205, %s206
      %p217 = scmp.eq.s32.totalorder %s34, 0
      %p218 = por %p216, %p217
      %p219 = scmp.ne.s32.totalorder %s205, %s206
      %p220 = scmp.eq.s32.totalorder %s35, 3
      %p221 = por %p219, %p220
      %p223 = scmp.ne.s32.totalorder %s206, %s222
      %p224 = scmp.eq.s32.totalorder %s35, 0
      %p225 = por %p223, %p224
      %s226 = ssub.s32 %s37, %s44
      %p227 = scmp.eq.s32.totalorder %s226, 0
      %s229 = sadd.s32 %s228, 1
      %s230 = scalar_select %p227, %s228, %s229
      %p233 = pneg %p227
      %p234 = scmp.eq.s32.totalorder %s29, 3
      %p235 = por %p233, %p234
      %p236 = scmp.ne.s32.totalorder %s228, %s231
      %p237 = scmp.eq.s32.totalorder %s29, 0
      %p238 = por %p236, %p237
      %p239 = scmp.ne.s32.totalorder %s228, %s231
      %p240 = scmp.eq.s32.totalorder %s34, 3
      %p241 = por %p239, %p240
      %p242 = scmp.ne.s32.totalorder %s231, %s232
      %p243 = scmp.eq.s32.totalorder %s34, 0
      %p244 = por %p242, %p243
      %p245 = scmp.ne.s32.totalorder %s231, %s232
      %p246 = scmp.eq.s32.totalorder %s35, 3
      %p247 = por %p245, %p246
      %p249 = scmp.ne.s32.totalorder %s232, %s248
      %p250 = scmp.eq.s32.totalorder %s35, 0
      %p251 = por %p249, %p250
      %s252 = ssub.s32 %s37, %s44
      %p253 = scmp.eq.s32.totalorder %s252, 0
      %s255 = sadd.s32 %s254, 1
      %s256 = scalar_select %p253, %s254, %s255
      %p259 = pneg %p253
      %p260 = scmp.eq.s32.totalorder %s29, 3
      %p261 = por %p259, %p260
      %p262 = scmp.ne.s32.totalorder %s254, %s257
      %p263 = scmp.eq.s32.totalorder %s29, 0
      %p264 = por %p262, %p263
      %p265 = scmp.ne.s32.totalorder %s254, %s257
      %p266 = scmp.eq.s32.totalorder %s34, 3
      %p267 = por %p265, %p266
      %p268 = scmp.ne.s32.totalorder %s257, %s258
      %p269 = scmp.eq.s32.totalorder %s34, 0
      %p270 = por %p268, %p269
      %p271 = scmp.ne.s32.totalorder %s257, %s258
      %p272 = scmp.eq.s32.totalorder %s35, 3
      %p273 = por %p271, %p272
      %p275 = scmp.ne.s32.totalorder %s258, %s274
      %p276 = scmp.eq.s32.totalorder %s35, 0
      %p277 = por %p275, %p276
      %s278 = ssub.s32 %s37, %s44
      %p279 = scmp.eq.s32.totalorder %s278, 0
      %s281 = sadd.s32 %s280, 1
      %s282 = scalar_select %p279, %s280, %s281
      %p285 = pneg %p279
      %p286 = scmp.eq.s32.totalorder %s29, 3
      %p287 = por %p285, %p286
      %p288 = scmp.ne.s32.totalorder %s280, %s283
      %p289 = scmp.eq.s32.totalorder %s29, 0
      %p290 = por %p288, %p289
      %p291 = scmp.ne.s32.totalorder %s280, %s283
      %p292 = scmp.eq.s32.totalorder %s34, 3
      %p293 = por %p291, %p292
      %p294 = scmp.ne.s32.totalorder %s283, %s284
      %p295 = scmp.eq.s32.totalorder %s34, 0
      %p296 = por %p294, %p295
      %p297 = scmp.ne.s32.totalorder %s283, %s284
      %p298 = scmp.eq.s32.totalorder %s35, 3
      %p299 = por %p297, %p298
      %p301 = scmp.ne.s32.totalorder %s284, %s300
      %p302 = scmp.eq.s32.totalorder %s35, 0
      %p303 = por %p301, %p302
      %s304 = ssub.s32 %s37, %s44
      %p305 = scmp.eq.s32.totalorder %s304, 0
      %s307 = sadd.s32 %s306, 1
      %s308 = scalar_select %p305, %s306, %s307
      %p311 = pneg %p305
      %p312 = scmp.eq.s32.totalorder %s29, 3
      %p313 = por %p311, %p312
      %p314 = scmp.ne.s32.totalorder %s306, %s309
      %p315 = scmp.eq.s32.totalorder %s29, 0
      %p316 = por %p314, %p315
      %p317 = scmp.ne.s32.totalorder %s306, %s309
      %p318 = scmp.eq.s32.totalorder %s34, 3
      %p319 = por %p317, %p318
      %p320 = scmp.ne.s32.totalorder %s309, %s310
      %p321 = scmp.eq.s32.totalorder %s34, 0
      %p322 = por %p320, %p321
      %p323 = scmp.ne.s32.totalorder %s309, %s310
      %p324 = scmp.eq.s32.totalorder %s35, 3
      %p325 = por %p323, %p324
      %p327 = scmp.ne.s32.totalorder %s310, %s326
      %p328 = scmp.eq.s32.totalorder %s35, 0
      %p329 = por %p327, %p328
      %s330 = ssub.s32 %s37, %s44
      %p331 = scmp.eq.s32.totalorder %s330, 0
      %s333 = sadd.s32 %s332, 1
      %s334 = scalar_select %p331, %s332, %s333
      %p337 = pneg %p331
      %p338 = scmp.eq.s32.totalorder %s29, 3
      %p339 = por %p337, %p338
      %p340 = scmp.ne.s32.totalorder %s332, %s335
      %p341 = scmp.eq.s32.totalorder %s29, 0
      %p342 = por %p340, %p341
      %p343 = scmp.ne.s32.totalorder %s332, %s335
      %p344 = scmp.eq.s32.totalorder %s34, 3
      %p345 = por %p343, %p344
      %p346 = scmp.ne.s32.totalorder %s335, %s336
      %p347 = scmp.eq.s32.totalorder %s34, 0
      %p348 = por %p346, %p347
      %p349 = scmp.ne.s32.totalorder %s335, %s336
      %p350 = scmp.eq.s32.totalorder %s35, 3
      %p351 = por %p349, %p350
      %p353 = scmp.ne.s32.totalorder %s336, %s352
      %p354 = scmp.eq.s32.totalorder %s35, 0
      %p355 = por %p353, %p354
      %s356 = ssub.s32 %s37, %s44
      %p357 = scmp.eq.s32.totalorder %s356, 0
      %s359 = sadd.s32 %s358, 1
      %s360 = scalar_select %p357, %s358, %s359
      %p363 = pneg %p357
      %p364 = scmp.eq.s32.totalorder %s29, 3
      %p365 = por %p363, %p364
      %p366 = scmp.ne.s32.totalorder %s358, %s361
      %p367 = scmp.eq.s32.totalorder %s29, 0
      %p368 = por %p366, %p367
      %p369 = scmp.ne.s32.totalorder %s358, %s361
      %p370 = scmp.eq.s32.totalorder %s34, 3
      %p371 = por %p369, %p370
      %p372 = scmp.ne.s32.totalorder %s361, %s362
      %p373 = scmp.eq.s32.totalorder %s34, 0
      %p374 = por %p372, %p373
      %p375 = scmp.ne.s32.totalorder %s361, %s362
      %p376 = scmp.eq.s32.totalorder %s35, 3
      %p377 = por %p375, %p376
      %p379 = scmp.ne.s32.totalorder %s362, %s378
      %p380 = scmp.eq.s32.totalorder %s35, 0
      %p381 = por %p379, %p380
      %s383 = sadd.s32 %s382, 1
      %p386 = scmp.eq.s32.totalorder %s29, 3
      %p387 = scmp.ne.s32.totalorder %s382, %s384
      %p388 = scmp.eq.s32.totalorder %s29, 0
      %p389 = por %p387, %p388
      %p390 = scmp.ne.s32.totalorder %s382, %s384
      %p391 = scmp.eq.s32.totalorder %s34, 3
      %p392 = por %p390, %p391
      %p393 = scmp.ne.s32.totalorder %s384, %s385
      %p394 = scmp.eq.s32.totalorder %s34, 0
      %p395 = por %p393, %p394
      %p396 = scmp.ne.s32.totalorder %s384, %s385
      %p397 = scmp.eq.s32.totalorder %s35, 3
      %p398 = por %p396, %p397
      %p400 = scmp.ne.s32.totalorder %s385, %s399
      %p401 = scmp.eq.s32.totalorder %s35, 0
      %p402 = por %p400, %p401
      %s404 = sadd.s32 %s403, 1
      %p407 = scmp.eq.s32.totalorder %s29, 3
      %p408 = scmp.ne.s32.totalorder %s403, %s405
      %p409 = scmp.eq.s32.totalorder %s29, 0
      %p410 = por %p408, %p409
      %p411 = scmp.ne.s32.totalorder %s403, %s405
      %p412 = scmp.eq.s32.totalorder %s34, 3
      %p413 = por %p411, %p412
      %p414 = scmp.ne.s32.totalorder %s405, %s406
      %p415 = scmp.eq.s32.totalorder %s34, 0
      %p416 = por %p414, %p415
      %p417 = scmp.ne.s32.totalorder %s405, %s406
      %p418 = scmp.eq.s32.totalorder %s35, 3
      %p419 = por %p417, %p418
      %p421 = scmp.ne.s32.totalorder %s406, %s420
      %p422 = scmp.eq.s32.totalorder %s35, 0
      %p423 = por %p421, %p422
      %s424 = ssub.s32 %s36, %s48
      %p425 = scmp.eq.s32.totalorder %s424, 0
      %s427 = sadd.s32 %s426, 1
      %s428 = scalar_select %p425, %s426, %s427
      %p431 = pneg %p425
      %p432 = scmp.eq.s32.totalorder %s29, 3
      %p433 = por %p431, %p432
      %p434 = scmp.ne.s32.totalorder %s426, %s429
      %p435 = scmp.eq.s32.totalorder %s29, 0
      %p436 = por %p434, %p435
      %p437 = scmp.ne.s32.totalorder %s426, %s429
      %p438 = scmp.eq.s32.totalorder %s34, 3
      %p439 = por %p437, %p438
      %p440 = scmp.ne.s32.totalorder %s429, %s430
      %p441 = scmp.eq.s32.totalorder %s34, 0
      %p442 = por %p440, %p441
      %p443 = scmp.ne.s32.totalorder %s429, %s430
      %p444 = scmp.eq.s32.totalorder %s35, 3
      %p445 = por %p443, %p444
      %p447 = scmp.ne.s32.totalorder %s430, %s446
      %p448 = scmp.eq.s32.totalorder %s35, 0
      %p449 = por %p447, %p448
      %s450 = ssub.s32 %s36, %s48
      %p451 = scmp.eq.s32.totalorder %s450, 0
      %s453 = sadd.s32 %s452, 1
      %s454 = scalar_select %p451, %s452, %s453
      %p457 = pneg %p451
      %p458 = scmp.eq.s32.totalorder %s29, 3
      %p459 = por %p457, %p458
      %p460 = scmp.ne.s32.totalorder %s452, %s455
      %p461 = scmp.eq.s32.totalorder %s29, 0
      %p462 = por %p460, %p461
      %p463 = scmp.ne.s32.totalorder %s452, %s455
      %p464 = scmp.eq.s32.totalorder %s34, 3
      %p465 = por %p463, %p464
      %p466 = scmp.ne.s32.totalorder %s455, %s456
      %p467 = scmp.eq.s32.totalorder %s34, 0
      %p468 = por %p466, %p467
      %p469 = scmp.ne.s32.totalorder %s455, %s456
      %p470 = scmp.eq.s32.totalorder %s35, 3
      %p471 = por %p469, %p470
      %p473 = scmp.ne.s32.totalorder %s456, %s472
      %p474 = scmp.eq.s32.totalorder %s35, 0
      %p475 = por %p473, %p474
      %p476 = scmp.le.s32.totalorder 1, %s29
      %p477 = scmp.lt.s32.totalorder %s29, 5
      %p478 = pnand %p476, %p477
      %p479 = pneg %p478
      // Predicated region
      $region9: #{textnet_forward.1} parent=5 // pred_check
        _
      $region10: #{textnet_forward.1} parent=5 // pred_check_branch
        %481 = sbr.rel (%p478) target = $region12
      $region11: #{textnet_forward.1} parent=5 // pred_region
        %s482 = ssub.s32 %s29, 1
        // Predicated region
        $region13: #{textnet_forward.1} parent=11 // pred_check
          %p483 = pneg %p114
        $region14: #{textnet_forward.1} parent=11 // pred_check_branch
          %485 = sbr.rel (%p483) target = $region16
        $region15: #{textnet_forward.1} parent=11 // pred_region
          _
        $region16: #{textnet_forward.1} parent=11 // pred_fallthru
          _
        // Predicated region
        $region17: #{textnet_forward.1} parent=11 // pred_check
          %p486 = pneg %p395
        $region18: #{textnet_forward.1} parent=11 // pred_check_branch
          %488 = sbr.rel (%p486) target = $region20
        $region19: #{textnet_forward.1} parent=11 // pred_region
          _
        $region20: #{textnet_forward.1} parent=11 // pred_fallthru
          _
        // Predicated region
        $region21: #{textnet_forward.1} parent=11 // pred_check
          %p489 = pneg %p416
        $region22: #{textnet_forward.1} parent=11 // pred_check_branch
          %491 = sbr.rel (%p489) target = $region24
        $region23: #{textnet_forward.1} parent=11 // pred_region
          _
        $region24: #{textnet_forward.1} parent=11 // pred_fallthru
          _
      $region12: #{textnet_forward.1} parent=5 // pred_fallthru
        _
      %p492 = scmp.lt.s32.totalorder %s29, 4
      // Predicated region
      $region25: #{textnet_forward.1} parent=5 // pred_check
        %p493 = pneg %p492
      $region26: #{textnet_forward.1} parent=5 // pred_check_branch
        %495 = sbr.rel (%p493) target = $region28
      $region27: #{textnet_forward.1} parent=5 // pred_region
        // Predicated region
        $region29: #{textnet_forward.1} parent=27 // pred_check
          %p496 = pneg %p61
        $region30: #{textnet_forward.1} parent=27 // pred_check_branch
          %498 = sbr.rel (%p496) target = $region32
        $region31: #{textnet_forward.1} parent=27 // pred_region
          %p499 = scmp.lt.s32.totalorder %s36, 1
          %s500 = scalar_select %p499, %s36, 1
          %s501 = smul.addr %s500, 8
          %s502 = scalar_lea.vmem %s0, %s501
        $region32: #{textnet_forward.1} parent=27 // pred_fallthru
          _
        // Predicated region
        $region33: #{textnet_forward.1} parent=27 // pred_check
          %p503 = pneg %p87
        $region34: #{textnet_forward.1} parent=27 // pred_check_branch
          %505 = sbr.rel (%p503) target = $region36
        $region35: #{textnet_forward.1} parent=27 // pred_region
          %p506 = scmp.lt.s32.totalorder %s36, 1
          %s507 = scalar_select %p506, %s36, 1
          %s508 = scalar_lea.vmem %s1, %s507
        $region36: #{textnet_forward.1} parent=27 // pred_fallthru
          _
        // Predicated region
        $region37: #{textnet_forward.1} parent=27 // pred_check
          %p509 = pneg %p134
        $region38: #{textnet_forward.1} parent=27 // pred_check_branch
          %511 = sbr.rel (%p509) target = $region40
        $region39: #{textnet_forward.1} parent=27 // pred_region
          %p512 = scmp.lt.s32.totalorder %s37, 1
          %s513 = scalar_select %p512, %s37, 1
          %s514 = smul.addr %s513, 4
          %s515 = smul.addr %s514, 4
          %s516 = scalar_lea.vmem %s3, %s515
        $region40: #{textnet_forward.1} parent=27 // pred_fallthru
          _
        // Predicated region
        $region41: #{textnet_forward.1} parent=27 // pred_check
          %p517 = pneg %p160
        $region42: #{textnet_forward.1} parent=27 // pred_check_branch
          %519 = sbr.rel (%p517) target = $region44
        $region43: #{textnet_forward.1} parent=27 // pred_region
          %p520 = scmp.lt.s32.totalorder %s37, 1
          %s521 = scalar_select %p520, %s37, 1
          %s522 = scalar_lea.vmem %s4, %s521
        $region44: #{textnet_forward.1} parent=27 // pred_fallthru
          _
        // Predicated region
        $region45: #{textnet_forward.1} parent=27 // pred_check
          %p523 = pneg %p186
        $region46: #{textnet_forward.1} parent=27 // pred_check_branch
          %525 = sbr.rel (%p523) target = $region48
        $region47: #{textnet_forward.1} parent=27 // pred_region
          %p526 = scmp.lt.s32.totalorder %s37, 1
          %s527 = scalar_select %p526, %s37, 1
          %s528 = smul.addr %s527, 4
          %s529 = smul.addr %s528, 4
          %s530 = scalar_lea.vmem %s5, %s529
        $region48: #{textnet_forward.1} parent=27 // pred_fallthru
          _
        // Predicated region
        $region49: #{textnet_forward.1} parent=27 // pred_check
          %p531 = pneg %p212
        $region50: #{textnet_forward.1} parent=27 // pred_check_branch
          %533 = sbr.rel (%p531) target = $region52
        $region51: #{textnet_forward.1} parent=27 // pred_region
          %p534 = scmp.lt.s32.totalorder %s37, 1
          %s535 = scalar_select %p534, %s37, 1
          %s536 = scalar_lea.vmem %s6, %s535
        $region52: #{textnet_forward.1} parent=27 // pred_fallthru
          _
        // Predicated region
        $region53: #{textnet_forward.1} parent=27 // pred_check
          %p537 = pneg %p238
        $region54: #{textnet_forward.1} parent=27 // pred_check_branch
          %539 = sbr.rel (%p537) target = $region56
        $region55: #{textnet_forward.1} parent=27 // pred_region
          %p540 = scmp.lt.s32.totalorder %s37, 1
          %s541 = scalar_select %p540, %s37, 1
          %s542 = smul.addr %s541, 4
          %s543 = smul.addr %s542, 4
          %s544 = scalar_lea.vmem %s7, %s543
        $region56: #{textnet_forward.1} parent=27 // pred_fallthru
          _
        // Predicated region
        $region57: #{textnet_forward.1} parent=27 // pred_check
          %p545 = pneg %p264
        $region58: #{textnet_forward.1} parent=27 // pred_check_branch
          %547 = sbr.rel (%p545) target = $region60
        $region59: #{textnet_forward.1} parent=27 // pred_region
          %p548 = scmp.lt.s32.totalorder %s37, 1
          %s549 = scalar_select %p548, %s37, 1
          %s550 = scalar_lea.vmem %s8, %s549
        $region60: #{textnet_forward.1} parent=27 // pred_fallthru
          _
        // Predicated region
        $region61: #{textnet_forward.1} parent=27 // pred_check
          %p551 = pneg %p290
        $region62: #{textnet_forward.1} parent=27 // pred_check_branch
          %553 = sbr.rel (%p551) target = $region64
        $region63: #{textnet_forward.1} parent=27 // pred_region
          %p554 = scmp.lt.s32.totalorder %s37, 1
          %s555 = scalar_select %p554, %s37, 1
          %s556 = smul.addr %s555, 8
          %s557 = smul.addr %s556, 4
          %s558 = scalar_lea.vmem %s9, %s557
        $region64: #{textnet_forward.1} parent=27 // pred_fallthru
          _
        // Predicated region
        $region65: #{textnet_forward.1} parent=27 // pred_check
          %p559 = pneg %p316
        $region66: #{textnet_forward.1} parent=27 // pred_check_branch
          %561 = sbr.rel (%p559) target = $region68
        $region67: #{textnet_forward.1} parent=27 // pred_region
          %p562 = scmp.lt.s32.totalorder %s37, 1
          %s563 = scalar_select %p562, %s37, 1
          %s564 = scalar_lea.vmem %s10, %s563
        $region68: #{textnet_forward.1} parent=27 // pred_fallthru
          _
        // Predicated region
        $region69: #{textnet_forward.1} parent=27 // pred_check
          %p565 = pneg %p342
        $region70: #{textnet_forward.1} parent=27 // pred_check_branch
          %567 = sbr.rel (%p565) target = $region72
        $region71: #{textnet_forward.1} parent=27 // pred_region
          %p568 = scmp.lt.s32.totalorder %s37, 1
          %s569 = scalar_select %p568, %s37, 1
          %s570 = smul.addr %s569, 2
          %s571 = scalar_lea.vmem %s11, %s570
        $region72: #{textnet_forward.1} parent=27 // pred_fallthru
          _
        // Predicated region
        $region73: #{textnet_forward.1} parent=27 // pred_check
          %p572 = pneg %p368
        $region74: #{textnet_forward.1} parent=27 // pred_check_branch
          %574 = sbr.rel (%p572) target = $region76
        $region75: #{textnet_forward.1} parent=27 // pred_region
          %p575 = scmp.lt.s32.totalorder %s37, 1
          %s576 = scalar_select %p575, %s37, 1
          %s577 = smul.addr %s576, 2
          %s578 = scalar_lea.vmem %s12, %s577
        $region76: #{textnet_forward.1} parent=27 // pred_fallthru
          _
      $region28: #{textnet_forward.1} parent=5 // pred_fallthru
        _
      %p579 = scmp.le.s32.totalorder 1, %s29
      %p580 = scmp.lt.s32.totalorder %s29, 5
      %p581 = pnand %p579, %p580
      %p582 = pneg %p581
      // Predicated region
      $region77: #{textnet_forward.1} parent=5 // pred_check
        _
      $region78: #{textnet_forward.1} parent=5 // pred_check_branch
        %584 = sbr.rel (%p581) target = $region80
      $region79: #{textnet_forward.1} parent=5 // pred_region
        %s585 = ssub.s32 %s29, 1
        %p586 = scmp.lt.s32.totalorder %s38, 1
        %s587 = scalar_select %p586, %s38, 1
        %s588 = smul.addr %s587, 8
        %s589 = scalar_lea.vmem %s0, %s588
        %p590 = pneg %p67
        %p591 = pneg %p64
        %p592 = scmp.lt.s32.totalorder %s38, 1
        %s593 = scalar_select %p592, %s38, 1
        %s594 = scalar_lea.vmem %s1, %s593
        %p595 = pneg %p93
        %p596 = pneg %p90
        %p597 = pneg %p114
        %p598 = pneg %p111
        %p599 = scmp.lt.s32.totalorder %s39, 1
        %s600 = scalar_select %p599, %s39, 1
        %s601 = smul.addr %s600, 4
        %s602 = smul.addr %s601, 4
        %s603 = scalar_lea.vmem %s3, %s602
        %p604 = pneg %p140
        %p605 = pneg %p137
        %p606 = scmp.lt.s32.totalorder %s39, 1
        %s607 = scalar_select %p606, %s39, 1
        %s608 = scalar_lea.vmem %s4, %s607
        %p609 = pneg %p166
        %p610 = pneg %p163
        %p611 = scmp.lt.s32.totalorder %s39, 1
        %s612 = scalar_select %p611, %s39, 1
        %s613 = smul.addr %s612, 4
        %s614 = smul.addr %s613, 4
        %s615 = scalar_lea.vmem %s5, %s614
        %p616 = pneg %p192
        %p617 = pneg %p189
        %p618 = scmp.lt.s32.totalorder %s39, 1
        %s619 = scalar_select %p618, %s39, 1
        %s620 = scalar_lea.vmem %s6, %s619
        %p621 = pneg %p218
        %p622 = pneg %p215
        %p623 = scmp.lt.s32.totalorder %s39, 1
        %s624 = scalar_select %p623, %s39, 1
        %s625 = smul.addr %s624, 4
        %s626 = smul.addr %s625, 4
        %s627 = scalar_lea.vmem %s7, %s626
        %p628 = pneg %p244
        %p629 = pneg %p241
        %p630 = scmp.lt.s32.totalorder %s39, 1
        %s631 = scalar_select %p630, %s39, 1
        %s632 = scalar_lea.vmem %s8, %s631
        %p633 = pneg %p270
        %p634 = pneg %p267
        %p635 = scmp.lt.s32.totalorder %s39, 1
        %s636 = scalar_select %p635, %s39, 1
        %s637 = smul.addr %s636, 8
        %s638 = smul.addr %s637, 4
        %s639 = scalar_lea.vmem %s9, %s638
        %p640 = pneg %p296
        %p641 = pneg %p293
        %p642 = scmp.lt.s32.totalorder %s39, 1
        %s643 = scalar_select %p642, %s39, 1
        %s644 = scalar_lea.vmem %s10, %s643
        %p645 = pneg %p322
        %p646 = pneg %p319
        %p647 = scmp.lt.s32.totalorder %s39, 1
        %s648 = scalar_select %p647, %s39, 1
        %s649 = smul.addr %s648, 2
        %s650 = scalar_lea.vmem %s11, %s649
        %p651 = pneg %p348
        %p652 = pneg %p345
        %p653 = scmp.lt.s32.totalorder %s39, 1
        %s654 = scalar_select %p653, %s39, 1
        %s655 = smul.addr %s654, 2
        %s656 = scalar_lea.vmem %s12, %s655
        %p657 = pneg %p374
        %p658 = pneg %p371
        %p659 = pneg %p395
        %p660 = pneg %p392
        %p661 = pneg %p416
        %p662 = pneg %p413
        %p663 = pneg %p442
        %p664 = pneg %p439
        %s665 = sand.u32 %s429, 1
        %s666 = scalar_lea.sflag [#allocation4], %s665
        %s667 = sand.u32 %s429, 1
        %s668 = scalar_lea.vmem [#allocation3], %s667
        %p669 = pneg %p468
        %p670 = pneg %p465
        %s671 = sand.u32 %s455, 1
        %s672 = scalar_lea.sflag [#allocation6], %s671
        %s673 = sand.u32 %s455, 1
        %s674 = scalar_lea.vmem [#allocation5], %s673
        %p675 = scmp.lt.s32.totalorder %s38, 1
        %s676 = scalar_select %p675, %s38, 1
        %s677 = smul.addr %s676, 8
        %s678 = scalar_lea.vmem %s0, %s677
        %p679 = scmp.lt.s32.totalorder %s38, 1
        %s680 = scalar_select %p679, %s38, 1
        %s681 = scalar_lea.vmem %s1, %s680
        %p682 = scmp.lt.s32.totalorder %s39, 1
        %s683 = scalar_select %p682, %s39, 1
        %s684 = smul.addr %s683, 4
        %s685 = smul.addr %s684, 4
        %s686 = scalar_lea.vmem %s3, %s685
        %p687 = scmp.lt.s32.totalorder %s39, 1
        %s688 = scalar_select %p687, %s39, 1
        %s689 = scalar_lea.vmem %s4, %s688
        %p690 = scmp.lt.s32.totalorder %s39, 1
        %s691 = scalar_select %p690, %s39, 1
        %s692 = smul.addr %s691, 4
        %s693 = smul.addr %s692, 4
        %s694 = scalar_lea.vmem %s5, %s693
        %p695 = scmp.lt.s32.totalorder %s39, 1
        %s696 = scalar_select %p695, %s39, 1
        %s697 = scalar_lea.vmem %s6, %s696
        %p698 = scmp.lt.s32.totalorder %s39, 1
        %s699 = scalar_select %p698, %s39, 1
        %s700 = smul.addr %s699, 4
        %s701 = smul.addr %s700, 4
        %s702 = scalar_lea.vmem %s7, %s701
        %p703 = scmp.lt.s32.totalorder %s39, 1
        %s704 = scalar_select %p703, %s39, 1
        %s705 = scalar_lea.vmem %s8, %s704
        %p706 = scmp.lt.s32.totalorder %s39, 1
        %s707 = scalar_select %p706, %s39, 1
        %s708 = smul.addr %s707, 8
        %s709 = smul.addr %s708, 4
        %s710 = scalar_lea.vmem %s9, %s709
        %p711 = scmp.lt.s32.totalorder %s39, 1
        %s712 = scalar_select %p711, %s39, 1
        %s713 = scalar_lea.vmem %s10, %s712
        %p714 = scmp.lt.s32.totalorder %s39, 1
        %s715 = scalar_select %p714, %s39, 1
        %s716 = smul.addr %s715, 2
        %s717 = scalar_lea.vmem %s11, %s716
        %p718 = scmp.lt.s32.totalorder %s39, 1
        %s719 = scalar_select %p718, %s39, 1
        %s720 = smul.addr %s719, 2
        %s721 = scalar_lea.vmem %s12, %s720
        %p723 = scmp.eq.s32.totalorder %s39, 0
        // Predicated region
        $region81: #{textnet_forward.1} parent=79 // pred_check
          %p724 = pneg %p723
        $region82: #{textnet_forward.1} parent=79 // pred_check_branch
          %726 = sbr.rel (%p724) target = $region84
        $region83: #{textnet_forward.1} parent=79 // pred_region
          %v727 = vld [vmem:[%s678] sm:$0xff]
          %v728 = vld [vmem:[%s2] sm:$0x1]
          %v729 = vld [vmem:[%s2 + $0x1] sm:$0x1]
          %vm730 = vcmask 261120
          %v731 = vsel %vm730, %v727, 0.0
          %732 = vadd.xlane.f32.xlu0 %v731
          %v733 = vpop.xlane.xlu0 %732
          %v734 = vrcp.pop 32.0
          %v735 = vmul.f32 %v733, %v734
          %v736 = vsub.f32 %v727, %v735
          %v737 = vmul.f32 %v736, %v736
          %v738 = vsel %vm730, %v737, 0.0
          %739 = vadd.xlane.f32.xlu0 %v738
          %v740 = vpop.xlane.xlu0 %739
          %v741 = vmul.f32 %v740, %v734
          %v742 = vadd.f32 %v741, 1e-12
          %v743 = vrsqrt.pop %v742
          %v744 = vmul.f32 %v736, %v743
          %v745 = vlaneseq
          %v746 = vshrl.u32 %v745, 7
          %v747 = vsub.s32 0, %v746
          %v748 = vrot.slane %v728, %v747
          %v749 = vmul.f32 %v744, %v748
          %v750 = vlaneseq
          %v751 = vshrl.u32 %v750, 7
          %v752 = vsub.s32 0, %v751
          %v753 = vrot.slane %v729, %v752
          %v754 = vadd.f32 %v749, %v753
          %755 = vst.msk [vmem:[#allocation2] sm:$0xff] %vm730, %v754
        $region84: #{textnet_forward.1} parent=79 // pred_fallthru
          _
        %v756 = vld [vmem:[#allocation2] sm:$0xff]
        %v757 = vpack.c.bf16 %v756, %v756
        %v758 = vld [vmem:[%s686] sm:$0xf]
        %v759 = vld [vmem:[%s686 + $0x4] sm:$0xf]
        %v760 = vld [vmem:[%s686 + $0x8] sm:$0xf]
        %v761 = vld [vmem:[%s686 + $0xc] sm:$0xf]
        %v762 = vld [vmem:[%s689] sm:$0x1]
        %v764 = vlaneseq
        %v765 = vshrl.u32 %v764, 7
        %v766 = vsub.s32 0, %v765
        %v767 = vrot.slane %v762, %v766
        %v773 = vunpack.c.l.b16 %v758
        %v774 = vunpack.c.l.b16 %v759
        %v775 = vunpack.c.l.b16 %v760
        %v776 = vunpack.c.l.b16 %v761
        %v777 = vpack.c.b16 %v774, %v773
        %v778 = vpack.c.b16 %v776, %v775
        %vm781 = vcmask 261120
        %v783 = vsel %vm781, %v757, 0
        %785 = vmatprep.subr.bf16.mxu0 0
        %786 = vmatpush1.bf16.msra.mxu0 %v777
        %787 = vmatprep.subr.bf16.mxu0 0
        %788 = vmatpush1.bf16.msra.mxu0 %v778
        %789 = vmatprep.subr.bf16.mxu0 0
        %790 = vmatpush1.bf16.msra.mxu0 0
        %791 = vmatprep.subr.bf16.mxu0 0
        %792 = vmatpush1.bf16.msra.mxu0 0
        %793 = vmatprep.subr.bf16.mxu0 0
        %794 = vmatpush1.bf16.msra.mxu0 0
        %795 = vmatprep.subr.bf16.mxu0 0
        %796 = vmatpush1.bf16.msra.mxu0 0
        %797 = vmatprep.subr.bf16.mxu0 0
        %798 = vmatpush1.bf16.msra.mxu0 0
        %799 = vmatprep.subr.bf16.mxu0 0
        %800 = vmatpush1.bf16.msra.mxu0 0
        %801 = vmatprep.subr.bf16.mxu0 0
        %802 = vmatpush1.bf16.msra.mxu0 0
        %803 = vmatprep.subr.bf16.mxu0 0
        %804 = vmatpush1.bf16.msra.mxu0 0
        %805 = vmatprep.subr.bf16.mxu0 0
        %806 = vmatpush1.bf16.msra.mxu0 0
        %807 = vmatprep.subr.bf16.mxu0 0
        %808 = vmatpush1.bf16.msra.mxu0 0
        %809 = vmatprep.subr.bf16.mxu0 0
        %810 = vmatpush1.bf16.msra.mxu0 0
        %811 = vmatprep.subr.bf16.mxu0 0
        %812 = vmatpush1.bf16.msra.mxu0 0
        %813 = vmatprep.subr.bf16.mxu0 0
        %814 = vmatpush1.bf16.msra.mxu0 0
        %815 = vmatprep.subr.bf16.mxu0 0
        %816 = vmatpush1.bf16.msra.mxu0 0
        %817 = vmatprep.mubr.bf16.mxu0 0
        %818 = vmatmul.mubr.bf16.gmra.mrb[0].mxu0 %v783
        %v819 = vpop.f32.mrb[0].mxu0
        %v820 = vadd.f32 %v767, %v819
        %v821 = vpop.f32.mrb[0].mxu0
        %v822 = vpop.f32.mrb[0].mxu0
        %v823 = vpop.f32.mrb[0].mxu0
        %824 = vdwg.mxu0
        %v825 = vld [vmem:[%s681] sm:$0x1]
        %v826 = vmul.f32 %v820, 0.25
        %v827 = vpack.c.bf16 %v826, %v826
        %v828 = vpack.c.bf16 %v820, %v820
        %v830 = vlaneseq
        %v831 = vshrl.u32 %v830, 7
        %v832 = vsub.s32 0, %v831
        %v833 = vrot.slane %v825, %v832
        %836 = vrot.lane.b32.xlu0 %v828, 96
        %v837 = vpop.permute.xlu0 %836
        %vm838 = vcmask 130048
        %v840 = vsel %vm838, %v827, 0
        %v843 = vsel %vm838, %v837, 0
        %845 = vmatprep.subr.bf16.mxu0 0
        %846 = vmatpush1.bf16.xpose.msra.mxu0 %v843
        %847 = vmatprep.subr.bf16.mxu0 0
        %848 = vmatpush1.bf16.xpose.msra.mxu0 0
        %849 = vmatprep.subr.bf16.mxu0 0
        %850 = vmatpush1.bf16.xpose.msra.mxu0 0
        %851 = vmatprep.subr.bf16.mxu0 0
        %852 = vmatpush1.bf16.xpose.msra.mxu0 0
        %853 = vmatprep.subr.bf16.mxu0 0
        %854 = vmatpush1.bf16.xpose.msra.mxu0 0
        %855 = vmatprep.subr.bf16.mxu0 0
        %856 = vmatpush1.bf16.xpose.msra.mxu0 0
        %857 = vmatprep.subr.bf16.mxu0 0
        %858 = vmatpush1.bf16.xpose.msra.mxu0 0
        %859 = vmatprep.subr.bf16.mxu0 0
        %860 = vmatpush1.bf16.xpose.msra.mxu0 0
        %861 = vmatprep.subr.bf16.mxu0 0
        %862 = vmatpush1.bf16.xpose.msra.mxu0 0
        %863 = vmatprep.subr.bf16.mxu0 0
        %864 = vmatpush1.bf16.xpose.msra.mxu0 0
        %865 = vmatprep.subr.bf16.mxu0 0
        %866 = vmatpush1.bf16.xpose.msra.mxu0 0
        %867 = vmatprep.subr.bf16.mxu0 0
        %868 = vmatpush1.bf16.xpose.msra.mxu0 0
        %869 = vmatprep.subr.bf16.mxu0 0
        %870 = vmatpush1.bf16.xpose.msra.mxu0 0
        %871 = vmatprep.subr.bf16.mxu0 0
        %872 = vmatpush1.bf16.xpose.msra.mxu0 0
        %873 = vmatprep.subr.bf16.mxu0 0
        %874 = vmatpush1.bf16.xpose.msra.mxu0 0
        %875 = vmatprep.subr.bf16.mxu0 0
        %876 = vmatpush1.bf16.xpose.msra.mxu0 0
        %877 = vmatprep.mubr.bf16.mxu0 0
        %878 = vmatmul.mubr.bf16.gmra.mrb[0].mxu0 %v840
        %v879 = vpop.f32.mrb[0].mxu0
        %v880 = vadd.f32 %v833, %v879
        %v881 = vpop.f32.mrb[0].mxu0
        %v882 = vpop.f32.mrb[0].mxu0
        %v883 = vpop.f32.mrb[0].mxu0
        %884 = vdwg.mxu0
        %vm885 = vcmask 64512
        %v886 = vsel %vm885, %v880, -inf
        %887 = vmax.xlane.f32.xlu0 %v886
        %v888 = vpop.xlane.xlu0 %887
        %v889 = vsub.f32 %v880, %v888
        %v890 = vmul.f32 %v889, 1.442695
        %v891 = vpow.pop %v890
        %v892 = vsel %vm885, %v891, 0.0
        %893 = vadd.xlane.f32.xlu0 %v892
        %v894 = vpop.xlane.xlu0 %893
        %v895 = vrcp.pop %v894
        %v896 = vmul.f32 %v891, %v895
        %v897 = vpack.c.bf16 %v896, %v896
        %898 = vrot.lane.b32.xlu0 %v828, 64
        %v899 = vpop.permute.xlu0 %898
        %v901 = vsel %vm885, %v897, 0
        %vm903 = vcmask 1043456
        %v905 = vsel %vm903, %v899, 0
        %907 = vmatprep.subr.bf16.mxu0 0
        %908 = vmatpush1.bf16.msra.mxu0 %v905
        %909 = vmatprep.subr.bf16.mxu0 0
        %910 = vmatpush1.bf16.msra.mxu0 0
        %911 = vmatprep.subr.bf16.mxu0 0
        %912 = vmatpush1.bf16.msra.mxu0 0
        %913 = vmatprep.subr.bf16.mxu0 0
        %914 = vmatpush1.bf16.msra.mxu0 0
        %915 = vmatprep.subr.bf16.mxu0 0
        %916 = vmatpush1.bf16.msra.mxu0 0
        %917 = vmatprep.subr.bf16.mxu0 0
        %918 = vmatpush1.bf16.msra.mxu0 0
        %919 = vmatprep.subr.bf16.mxu0 0
        %920 = vmatpush1.bf16.msra.mxu0 0
        %921 = vmatprep.subr.bf16.mxu0 0
        %922 = vmatpush1.bf16.msra.mxu0 0
        %923 = vmatprep.subr.bf16.mxu0 0
        %924 = vmatpush1.bf16.msra.mxu0 0
        %925 = vmatprep.subr.bf16.mxu0 0
        %926 = vmatpush1.bf16.msra.mxu0 0
        %927 = vmatprep.subr.bf16.mxu0 0
        %928 = vmatpush1.bf16.msra.mxu0 0
        %929 = vmatprep.subr.bf16.mxu0 0
        %930 = vmatpush1.bf16.msra.mxu0 0
        %931 = vmatprep.subr.bf16.mxu0 0
        %932 = vmatpush1.bf16.msra.mxu0 0
        %933 = vmatprep.subr.bf16.mxu0 0
        %934 = vmatpush1.bf16.msra.mxu0 0
        %935 = vmatprep.subr.bf16.mxu0 0
        %936 = vmatpush1.bf16.msra.mxu0 0
        %937 = vmatprep.subr.bf16.mxu0 0
        %938 = vmatpush1.bf16.msra.mxu0 0
        %939 = vmatprep.mubr.bf16.mxu0 0
        %940 = vmatmul.mubr.bf16.gmra.mrb[0].mxu0 %v901
        %v941 = vpop.f32.mrb[0].mxu0
        %v942 = vadd.f32 0.0, %v941
        %v943 = vpop.f32.mrb[0].mxu0
        %v944 = vpop.f32.mrb[0].mxu0
        %v945 = vpop.f32.mrb[0].mxu0
        %946 = vdwg.mxu0
        %948 = vrot.lane.b32.xlu0 %v827, 112
        %v949 = vpop.permute.xlu0 %948
        %950 = vrot.lane.b32.xlu0 %v828, 80
        %v951 = vpop.permute.xlu0 %950
        %v953 = vsel %vm838, %v949, 0
        %v956 = vsel %vm838, %v951, 0
        %958 = vmatprep.subr.bf16.mxu0 0
        %959 = vmatpush1.bf16.xpose.msra.mxu0 %v956
        %960 = vmatprep.subr.bf16.mxu0 0
        %961 = vmatpush1.bf16.xpose.msra.mxu0 0
        %962 = vmatprep.subr.bf16.mxu0 0
        %963 = vmatpush1.bf16.xpose.msra.mxu0 0
        %964 = vmatprep.subr.bf16.mxu0 0
        %965 = vmatpush1.bf16.xpose.msra.mxu0 0
        %966 = vmatprep.subr.bf16.mxu0 0
        %967 = vmatpush1.bf16.xpose.msra.mxu0 0
        %968 = vmatprep.subr.bf16.mxu0 0
        %969 = vmatpush1.bf16.xpose.msra.mxu0 0
        %970 = vmatprep.subr.bf16.mxu0 0
        %971 = vmatpush1.bf16.xpose.msra.mxu0 0
        %972 = vmatprep.subr.bf16.mxu0 0
        %973 = vmatpush1.bf16.xpose.msra.mxu0 0
        %974 = vmatprep.subr.bf16.mxu0 0
        %975 = vmatpush1.bf16.xpose.msra.mxu0 0
        %976 = vmatprep.subr.bf16.mxu0 0
        %977 = vmatpush1.bf16.xpose.msra.mxu0 0
        %978 = vmatprep.subr.bf16.mxu0 0
        %979 = vmatpush1.bf16.xpose.msra.mxu0 0
        %980 = vmatprep.subr.bf16.mxu0 0
        %981 = vmatpush1.bf16.xpose.msra.mxu0 0
        %982 = vmatprep.subr.bf16.mxu0 0
        %983 = vmatpush1.bf16.xpose.msra.mxu0 0
        %984 = vmatprep.subr.bf16.mxu0 0
        %985 = vmatpush1.bf16.xpose.msra.mxu0 0
        %986 = vmatprep.subr.bf16.mxu0 0
        %987 = vmatpush1.bf16.xpose.msra.mxu0 0
        %988 = vmatprep.subr.bf16.mxu0 0
        %989 = vmatpush1.bf16.xpose.msra.mxu0 0
        %990 = vmatprep.mubr.bf16.mxu0 0
        %991 = vmatmul.mubr.bf16.gmra.mrb[0].mxu0 %v953
        %v992 = vpop.f32.mrb[0].mxu0
        %v993 = vadd.f32 %v833, %v992
        %v994 = vpop.f32.mrb[0].mxu0
        %v995 = vpop.f32.mrb[0].mxu0
        %v996 = vpop.f32.mrb[0].mxu0
        %997 = vdwg.mxu0
        %v998 = vsel %vm885, %v993, -inf
        %999 = vmax.xlane.f32.xlu0 %v998
        %v1000 = vpop.xlane.xlu0 %999
        %v1001 = vsub.f32 %v993, %v1000
        %v1002 = vmul.f32 %v1001, 1.442695
        %v1003 = vpow.pop %v1002
        %v1004 = vsel %vm885, %v1003, 0.0
        %1005 = vadd.xlane.f32.xlu0 %v1004
        %v1006 = vpop.xlane.xlu0 %1005
        %v1007 = vrcp.pop %v1006
        %v1008 = vmul.f32 %v1003, %v1007
        %v1009 = vpack.c.bf16 %v1008, %v1008
        %1010 = vrot.lane.b32.xlu0 %v828, 48
        %v1011 = vpop.permute.xlu0 %1010
        %v1013 = vsel %vm885, %v1009, 0
        %v1016 = vsel %vm903, %v1011, 0
        %1018 = vmatprep.subr.bf16.mxu0 0
        %1019 = vmatpush1.bf16.msra.mxu0 %v1016
        %1020 = vmatprep.subr.bf16.mxu0 0
        %1021 = vmatpush1.bf16.msra.mxu0 0
        %1022 = vmatprep.subr.bf16.mxu0 0
        %1023 = vmatpush1.bf16.msra.mxu0 0
        %1024 = vmatprep.subr.bf16.mxu0 0
        %1025 = vmatpush1.bf16.msra.mxu0 0
        %1026 = vmatprep.subr.bf16.mxu0 0
        %1027 = vmatpush1.bf16.msra.mxu0 0
        %1028 = vmatprep.subr.bf16.mxu0 0
        %1029 = vmatpush1.bf16.msra.mxu0 0
        %1030 = vmatprep.subr.bf16.mxu0 0
        %1031 = vmatpush1.bf16.msra.mxu0 0
        %1032 = vmatprep.subr.bf16.mxu0 0
        %1033 = vmatpush1.bf16.msra.mxu0 0
        %1034 = vmatprep.subr.bf16.mxu0 0
        %1035 = vmatpush1.bf16.msra.mxu0 0
        %1036 = vmatprep.subr.bf16.mxu0 0
        %1037 = vmatpush1.bf16.msra.mxu0 0
        %1038 = vmatprep.subr.bf16.mxu0 0
        %1039 = vmatpush1.bf16.msra.mxu0 0
        %1040 = vmatprep.subr.bf16.mxu0 0
        %1041 = vmatpush1.bf16.msra.mxu0 0
        %1042 = vmatprep.subr.bf16.mxu0 0
        %1043 = vmatpush1.bf16.msra.mxu0 0
        %1044 = vmatprep.subr.bf16.mxu0 0
        %1045 = vmatpush1.bf16.msra.mxu0 0
        %1046 = vmatprep.subr.bf16.mxu0 0
        %1047 = vmatpush1.bf16.msra.mxu0 0
        %1048 = vmatprep.subr.bf16.mxu0 0
        %1049 = vmatpush1.bf16.msra.mxu0 0
        %1050 = vmatprep.mubr.bf16.mxu0 0
        %1051 = vmatmul.mubr.bf16.gmra.mrb[0].mxu0 %v1013
        %v1052 = vpop.f32.mrb[0].mxu0
        %v1053 = vadd.f32 0.0, %v1052
        %v1054 = vpop.f32.mrb[0].mxu0
        %v1055 = vpop.f32.mrb[0].mxu0
        %v1056 = vpop.f32.mrb[0].mxu0
        %1057 = vdwg.mxu0
        %1059 = vrot.lane.b32.xlu0 %v1053, 16
        %v1060 = vpop.permute.xlu0 %1059
        %v1062 = vsel %vm838, %v942, %v1060
        %v1063 = vpack.c.bf16 %v1062, %v1062
        %v1064 = vld [vmem:[%s694] sm:$0xf]
        %v1065 = vld [vmem:[%s694 + $0x4] sm:$0xf]
        %v1066 = vld [vmem:[%s694 + $0x8] sm:$0xf]
        %v1067 = vld [vmem:[%s694 + $0xc] sm:$0xf]
        %v1068 = vld [vmem:[%s697] sm:$0x1]
        %v1070 = vlaneseq
        %v1071 = vshrl.u32 %v1070, 7
        %v1072 = vsub.s32 0, %v1071
        %v1073 = vrot.slane %v1068, %v1072
        %v1079 = vunpack.c.l.b16 %v1064
        %v1080 = vunpack.c.l.b16 %v1065
        %v1081 = vunpack.c.l.b16 %v1066
        %v1082 = vunpack.c.l.b16 %v1067
        %v1083 = vpack.c.b16 %v1080, %v1079
        %v1084 = vpack.c.b16 %v1082, %v1081
        %v1088 = vsel %vm781, %v1063, 0
        %1090 = vmatprep.subr.bf16.mxu0 0
        %1091 = vmatpush1.bf16.msra.mxu0 %v1083
        %1092 = vmatprep.subr.bf16.mxu0 0
        %1093 = vmatpush1.bf16.msra.mxu0 %v1084
        %1094 = vmatprep.subr.bf16.mxu0 0
        %1095 = vmatpush1.bf16.msra.mxu0 0
        %1096 = vmatprep.subr.bf16.mxu0 0
        %1097 = vmatpush1.bf16.msra.mxu0 0
        %1098 = vmatprep.subr.bf16.mxu0 0
        %1099 = vmatpush1.bf16.msra.mxu0 0
        %1100 = vmatprep.subr.bf16.mxu0 0
        %1101 = vmatpush1.bf16.msra.mxu0 0
        %1102 = vmatprep.subr.bf16.mxu0 0
        %1103 = vmatpush1.bf16.msra.mxu0 0
        %1104 = vmatprep.subr.bf16.mxu0 0
        %1105 = vmatpush1.bf16.msra.mxu0 0
        %1106 = vmatprep.subr.bf16.mxu0 0
        %1107 = vmatpush1.bf16.msra.mxu0 0
        %1108 = vmatprep.subr.bf16.mxu0 0
        %1109 = vmatpush1.bf16.msra.mxu0 0
        %1110 = vmatprep.subr.bf16.mxu0 0
        %1111 = vmatpush1.bf16.msra.mxu0 0
        %1112 = vmatprep.subr.bf16.mxu0 0
        %1113 = vmatpush1.bf16.msra.mxu0 0
        %1114 = vmatprep.subr.bf16.mxu0 0
        %1115 = vmatpush1.bf16.msra.mxu0 0
        %1116 = vmatprep.subr.bf16.mxu0 0
        %1117 = vmatpush1.bf16.msra.mxu0 0
        %1118 = vmatprep.subr.bf16.mxu0 0
        %1119 = vmatpush1.bf16.msra.mxu0 0
        %1120 = vmatprep.subr.bf16.mxu0 0
        %1121 = vmatpush1.bf16.msra.mxu0 0
        %1122 = vmatprep.mubr.bf16.mxu0 0
        %1123 = vmatmul.mubr.bf16.gmra.mrb[0].mxu0 %v1088
        %v1124 = vpop.f32.mrb[0].mxu0
        %v1125 = vadd.f32 %v1073, %v1124
        %v1126 = vpop.f32.mrb[0].mxu0
        %v1127 = vpop.f32.mrb[0].mxu0
        %v1128 = vpop.f32.mrb[0].mxu0
        %1129 = vdwg.mxu0
        %v1130 = vadd.f32 %v1125, %v756
        %v1131 = vld [vmem:[%s717] sm:$0x1]
        %v1132 = vld [vmem:[%s717 + $0x1] sm:$0x1]
        %v1133 = vsel %vm781, %v1130, 0.0
        %1134 = vadd.xlane.f32.xlu0 %v1133
        %v1135 = vpop.xlane.xlu0 %1134
        %v1136 = vrcp.pop 32.0
        %v1137 = vmul.f32 %v1135, %v1136
        %v1138 = vsub.f32 %v1130, %v1137
        %v1139 = vmul.f32 %v1138, %v1138
        %v1140 = vsel %vm781, %v1139, 0.0
        %1141 = vadd.xlane.f32.xlu0 %v1140
        %v1142 = vpop.xlane.xlu0 %1141
        %v1143 = vmul.f32 %v1142, %v1136
        %v1144 = vadd.f32 %v1143, 1e-12
        %v1145 = vrsqrt.pop %v1144
        %v1146 = vmul.f32 %v1138, %v1145
        %v1147 = vlaneseq
        %v1148 = vshrl.u32 %v1147, 7
        %v1149 = vsub.s32 0, %v1148
        %v1150 = vrot.slane %v1131, %v1149
        %v1151 = vmul.f32 %v1146, %v1150
        %v1152 = vlaneseq
        %v1153 = vshrl.u32 %v1152, 7
        %v1154 = vsub.s32 0, %v1153
        %v1155 = vrot.slane %v1132, %v1154
        %v1156 = vadd.f32 %v1151, %v1155
        %v1157 = vpack.c.bf16 %v1156, %v1156
        %v1158 = vld [vmem:[%s702] sm:$0xf]
        %v1159 = vld [vmem:[%s702 + $0x4] sm:$0xf]
        %v1160 = vld [vmem:[%s702 + $0x8] sm:$0xf]
        %v1161 = vld [vmem:[%s702 + $0xc] sm:$0xf]
        %v1162 = vld [vmem:[%s705] sm:$0x1]
        %v1164 = vlaneseq
        %v1165 = vshrl.u32 %v1164, 7
        %v1166 = vsub.s32 0, %v1165
        %v1167 = vrot.slane %v1162, %v1166
        %v1173 = vunpack.c.l.b16 %v1158
        %v1174 = vunpack.c.l.b16 %v1159
        %v1175 = vunpack.c.l.b16 %v1160
        %v1176 = vunpack.c.l.b16 %v1161
        %v1177 = vpack.c.b16 %v1174, %v1173
        %v1178 = vpack.c.b16 %v1176, %v1175
        %v1182 = vsel %vm781, %v1157, 0
        %1184 = vmatprep.subr.bf16.mxu0 0
        %1185 = vmatpush1.bf16.msra.mxu0 %v1177
        %1186 = vmatprep.subr.bf16.mxu0 0
        %1187 = vmatpush1.bf16.msra.mxu0 %v1178
        %1188 = vmatprep.subr.bf16.mxu0 0
        %1189 = vmatpush1.bf16.msra.mxu0 0
        %1190 = vmatprep.subr.bf16.mxu0 0
        %1191 = vmatpush1.bf16.msra.mxu0 0
        %1192 = vmatprep.subr.bf16.mxu0 0
        %1193 = vmatpush1.bf16.msra.mxu0 0
        %1194 = vmatprep.subr.bf16.mxu0 0
        %1195 = vmatpush1.bf16.msra.mxu0 0
        %1196 = vmatprep.subr.bf16.mxu0 0
        %1197 = vmatpush1.bf16.msra.mxu0 0
        %1198 = vmatprep.subr.bf16.mxu0 0
        %1199 = vmatpush1.bf16.msra.mxu0 0
        %1200 = vmatprep.subr.bf16.mxu0 0
        %1201 = vmatpush1.bf16.msra.mxu0 0
        %1202 = vmatprep.subr.bf16.mxu0 0
        %1203 = vmatpush1.bf16.msra.mxu0 0
        %1204 = vmatprep.subr.bf16.mxu0 0
        %1205 = vmatpush1.bf16.msra.mxu0 0
        %1206 = vmatprep.subr.bf16.mxu0 0
        %1207 = vmatpush1.bf16.msra.mxu0 0
        %1208 = vmatprep.subr.bf16.mxu0 0
        %1209 = vmatpush1.bf16.msra.mxu0 0
        %1210 = vmatprep.subr.bf16.mxu0 0
        %1211 = vmatpush1.bf16.msra.mxu0 0
        %1212 = vmatprep.subr.bf16.mxu0 0
        %1213 = vmatpush1.bf16.msra.mxu0 0
        %1214 = vmatprep.subr.bf16.mxu0 0
        %1215 = vmatpush1.bf16.msra.mxu0 0
        %1216 = vmatprep.mubr.bf16.mxu0 0
        %1217 = vmatmul.mubr.bf16.gmra.mrb[0].mxu0 %v1182
        %v1218 = vpop.f32.mrb[0].mxu0
        %v1219 = vadd.f32 %v1167, %v1218
        %v1220 = vpop.f32.mrb[0].mxu0
        %v1221 = vpop.f32.mrb[0].mxu0
        %v1222 = vpop.f32.mrb[0].mxu0
        %1223 = vdwg.mxu0
        %v1224 = vmul.f32 %v1219, %v1219
        %v1225 = vmul.f32 %v1219, %v1224
        %v1226 = vmul.f32 %v1225, 0.044715
        %v1227 = vadd.f32 %v1219, %v1226
        %v1228 = vmul.f32 %v1227, 0.7978846
        %v1229 = vtanh.pop %v1228
        %v1230 = vadd.f32 %v1229, 1.0
        %v1231 = vmul.f32 %v1230, 0.5
        %v1232 = vmul.f32 %v1219, %v1231
        %v1233 = vpack.c.bf16 %v1232, %v1232
        %v1234 = vld [vmem:[%s710] sm:$0xf]
        %v1235 = vld [vmem:[%s710 + $0x4] sm:$0xf]
        %v1236 = vld [vmem:[%s710 + $0x8] sm:$0xf]
        %v1237 = vld [vmem:[%s710 + $0xc] sm:$0xf]
        %v1238 = vld [vmem:[%s710 + $0x10] sm:$0xf]
        %v1239 = vld [vmem:[%s710 + $0x14] sm:$0xf]
        %v1240 = vld [vmem:[%s710 + $0x18] sm:$0xf]
        %v1241 = vld [vmem:[%s710 + $0x1c] sm:$0xf]
        %v1242 = vld [vmem:[%s713] sm:$0x1]
        %v1244 = vlaneseq
        %v1245 = vshrl.u32 %v1244, 7
        %v1246 = vsub.s32 0, %v1245
        %v1247 = vrot.slane %v1242, %v1246
        %v1257 = vunpack.c.l.b16 %v1234
        %v1258 = vunpack.c.l.b16 %v1235
        %v1259 = vunpack.c.l.b16 %v1236
        %v1260 = vunpack.c.l.b16 %v1237
        %v1261 = vunpack.c.l.b16 %v1238
        %v1262 = vunpack.c.l.b16 %v1239
        %v1263 = vunpack.c.l.b16 %v1240
        %v1264 = vunpack.c.l.b16 %v1241
        %v1265 = vpack.c.b16 %v1258, %v1257
        %v1266 = vpack.c.b16 %v1260, %v1259
        %v1267 = vpack.c.b16 %v1262, %v1261
        %v1268 = vpack.c.b16 %v1264, %v1263
        %vm1273 = vcmask 523264
        %v1275 = vsel %vm1273, %v1233, 0
        %1277 = vmatprep.subr.bf16.mxu0 0
        %1278 = vmatpush1.bf16.msra.mxu0 %v1265
        %1279 = vmatprep.subr.bf16.mxu0 0
        %1280 = vmatpush1.bf16.msra.mxu0 %v1266
        %1281 = vmatprep.subr.bf16.mxu0 0
        %1282 = vmatpush1.bf16.msra.mxu0 %v1267
        %1283 = vmatprep.subr.bf16.mxu0 0
        %1284 = vmatpush1.bf16.msra.mxu0 %v1268
        %1285 = vmatprep.subr.bf16.mxu0 0
        %1286 = vmatpush1.bf16.msra.mxu0 0
        %1287 = vmatprep.subr.bf16.mxu0 0
        %1288 = vmatpush1.bf16.msra.mxu0 0
        %1289 = vmatprep.subr.bf16.mxu0 0
        %1290 = vmatpush1.bf16.msra.mxu0 0
        %1291 = vmatprep.subr.bf16.mxu0 0
        %1292 = vmatpush1.bf16.msra.mxu0 0
        %1293 = vmatprep.subr.bf16.mxu0 0
        %1294 = vmatpush1.bf16.msra.mxu0 0
        %1295 = vmatprep.subr.bf16.mxu0 0
        %1296 = vmatpush1.bf16.msra.mxu0 0
        %1297 = vmatprep.subr.bf16.mxu0 0
        %1298 = vmatpush1.bf16.msra.mxu0 0
        %1299 = vmatprep.subr.bf16.mxu0 0
        %1300 = vmatpush1.bf16.msra.mxu0 0
        %1301 = vmatprep.subr.bf16.mxu0 0
        %1302 = vmatpush1.bf16.msra.mxu0 0
        %1303 = vmatprep.subr.bf16.mxu0 0
        %1304 = vmatpush1.bf16.msra.mxu0 0
        %1305 = vmatprep.subr.bf16.mxu0 0
        %1306 = vmatpush1.bf16.msra.mxu0 0
        %1307 = vmatprep.subr.bf16.mxu0 0
        %1308 = vmatpush1.bf16.msra.mxu0 0
        %1309 = vmatprep.mubr.bf16.mxu0 0
        %1310 = vmatmul.mubr.bf16.gmra.mrb[0].mxu0 %v1275
        %v1311 = vpop.f32.mrb[0].mxu0
        %v1312 = vadd.f32 %v1247, %v1311
        %v1313 = vpop.f32.mrb[0].mxu0
        %v1314 = vpop.f32.mrb[0].mxu0
        %v1315 = vpop.f32.mrb[0].mxu0
        %1316 = vdwg.mxu0
        %v1317 = vadd.f32 %v1312, %v1156
        %v1318 = vld [vmem:[%s721] sm:$0x1]
        %v1319 = vld [vmem:[%s721 + $0x1] sm:$0x1]
        %v1320 = vsel %vm781, %v1317, 0.0
        %1321 = vadd.xlane.f32.xlu0 %v1320
        %v1322 = vpop.xlane.xlu0 %1321
        %v1323 = vmul.f32 %v1322, %v1136
        %v1324 = vsub.f32 %v1317, %v1323
        %v1325 = vmul.f32 %v1324, %v1324
        %v1326 = vsel %vm781, %v1325, 0.0
        %1327 = vadd.xlane.f32.xlu0 %v1326
        %v1328 = vpop.xlane.xlu0 %1327
        %v1329 = vmul.f32 %v1328, %v1136
        %v1330 = vadd.f32 %v1329, 1e-12
        %v1331 = vrsqrt.pop %v1330
        %v1332 = vmul.f32 %v1324, %v1331
        %v1333 = vlaneseq
        %v1334 = vshrl.u32 %v1333, 7
        %v1335 = vsub.s32 0, %v1334
        %v1336 = vrot.slane %v1318, %v1335
        %v1337 = vmul.f32 %v1332, %v1336
        %v1338 = vlaneseq
        %v1339 = vshrl.u32 %v1338, 7
        %v1340 = vsub.s32 0, %v1339
        %v1341 = vrot.slane %v1319, %v1340
        %v1342 = vadd.f32 %v1337, %v1341
        %1343 = vst.msk [vmem:[#allocation2] sm:$0xff] %vm781, %v1342
        %p1344 = scmp.eq.s32.totalorder %s39, 1
        // Predicated region
        $region85: #{textnet_forward.1} parent=79 // pred_check
          %p1345 = pneg %p1344
        $region86: #{textnet_forward.1} parent=79 // pred_check_branch
          %1347 = sbr.rel (%p1345) target = $region88
        $region87: #{textnet_forward.1} parent=79 // pred_region
          %vm1348 = vcmask 253952
          %1349 = vst.msk [vmem:[%s674] sm:$0x1] %vm1348, %v1342
          %v1350 = vmax.f32 %v1342, 0.0
          %v1351 = vpack.c.bf16 %v1350, %v1350
          %v1352 = vld [vmem:[%s13] sm:$0xf]
          %v1353 = vld [vmem:[%s13 + $0x4] sm:$0xf]
          %v1354 = vld [vmem:[%s13 + $0x8] sm:$0xf]
          %v1355 = vld [vmem:[%s13 + $0xc] sm:$0xf]
          %v1356 = vld [vmem:[%s14] sm:$0x1]
          %v1361 = vunpack.c.l.b16 %v1352
          %v1362 = vunpack.c.l.b16 %v1353
          %v1363 = vunpack.c.l.b16 %v1354
          %v1364 = vunpack.c.l.b16 %v1355
          %v1365 = vpack.c.b16 %v1362, %v1361
          %v1366 = vpack.c.b16 %v1364, %v1363
          %v1370 = vsel %vm781, %v1351, 0
          %1372 = vmatprep.subr.bf16.mxu0 0
          %1373 = vmatpush1.bf16.msra.mxu0 %v1365
          %1374 = vmatprep.subr.bf16.mxu0 0
          %1375 = vmatpush1.bf16.msra.mxu0 %v1366
          %1376 = vmatprep.subr.bf16.mxu0 0
          %1377 = vmatpush1.bf16.msra.mxu0 0
          %1378 = vmatprep.subr.bf16.mxu0 0
          %1379 = vmatpush1.bf16.msra.mxu0 0
          %1380 = vmatprep.subr.bf16.mxu0 0
          %1381 = vmatpush1.bf16.msra.mxu0 0
          %1382 = vmatprep.subr.bf16.mxu0 0
          %1383 = vmatpush1.bf16.msra.mxu0 0
          %1384 = vmatprep.subr.bf16.mxu0 0
          %1385 = vmatpush1.bf16.msra.mxu0 0
          %1386 = vmatprep.subr.bf16.mxu0 0
          %1387 = vmatpush1.bf16.msra.mxu0 0
          %1388 = vmatprep.subr.bf16.mxu0 0
          %1389 = vmatpush1.bf16.msra.mxu0 0
          %1390 = vmatprep.subr.bf16.mxu0 0
          %1391 = vmatpush1.bf16.msra.mxu0 0
          %1392 = vmatprep.subr.bf16.mxu0 0
          %1393 = vmatpush1.bf16.msra.mxu0 0
          %1394 = vmatprep.subr.bf16.mxu0 0
          %1395 = vmatpush1.bf16.msra.mxu0 0
          %1396 = vmatprep.subr.bf16.mxu0 0
          %1397 = vmatpush1.bf16.msra.mxu0 0
          %1398 = vmatprep.subr.bf16.mxu0 0
          %1399 = vmatpush1.bf16.msra.mxu0 0
          %1400 = vmatprep.subr.bf16.mxu0 0
          %1401 = vmatpush1.bf16.msra.mxu0 0
          %1402 = vmatprep.subr.bf16.mxu0 0
          %1403 = vmatpush1.bf16.msra.mxu0 0
          %1404 = vmatprep.mubr.bf16.mxu0 0
          %1405 = vmatmul.mubr.bf16.gmra.mrb[0].mxu0 %v1370
          %v1406 = vpop.f32.mrb[0].mxu0
          %v1407 = vadd.f32 %v1356, %v1406
          %v1408 = vpop.f32.mrb[0].mxu0
          %v1409 = vpop.f32.mrb[0].mxu0
          %v1410 = vpop.f32.mrb[0].mxu0
          %1411 = vdwg.mxu0
          %v1412 = vxor.u32 %v1407, 2147483648
          %v1413 = vmul.f32 %v1412, 1.442695
          %v1414 = vpow.pop %v1413
          %v1415 = vadd.f32 %v1414, 1.0
          %v1416 = vrcp.pop %v1415
          %v1417 = vmul.f32 1.0, %v1416
          %vm1418 = vcmask 516096
          %1419 = vst.msk [vmem:[%s668] sm:$0x1] %vm1418, %v1417
        $region88: #{textnet_forward.1} parent=79 // pred_fallthru
          _
        %s1420 = sand.u32 %s429, 1
        %s1421 = scalar_lea.sflag [#allocation4], %s1420
        %s1422 = sand.u32 %s429, 1
        %s1423 = scalar_lea.vmem [#allocation3], %s1422
        %s1424 = sand.u32 %s455, 1
        %s1425 = scalar_lea.sflag [#allocation6], %s1424
        %s1426 = sand.u32 %s455, 1
        %s1427 = scalar_lea.vmem [#allocation5], %s1426
        // Predicated region
        $region89: #{textnet_forward.1} parent=79 // pred_check
          %p1428 = pneg %p439
        $region90: #{textnet_forward.1} parent=79 // pred_check_branch
          %1430 = sbr.rel (%p1428) target = $region92
        $region91: #{textnet_forward.1} parent=79 // pred_region
          %s1432 = ssub.s32 16, 16
          %1433 = vsyncadd %s1421, %s1432
          %s1434 = smul.addr %s38, 16
          %s1435 = scalar_lea.hbm %s15, %s1434
          %s1437 = sshll.u32 %s1423, 4
          %s1438 = int_to_ptr.vmem [resolvable:$true] %s1437
          %1440 = dma.vmem_to_hbm [thread:$0]  %s1438, 16, %s1435, %s1421
        $region92: #{textnet_forward.1} parent=79 // pred_fallthru
          _
        // Predicated region
        $region93: #{textnet_forward.1} parent=79 // pred_check
          %p1441 = pneg %p465
        $region94: #{textnet_forward.1} parent=79 // pred_check_branch
          %1443 = sbr.rel (%p1441) target = $region96
        $region95: #{textnet_forward.1} parent=79 // pred_region
          %s1445 = ssub.s32 16, 16
          %1446 = vsyncadd %s1425, %s1445
          %s1447 = smul.addr %s38, 16
          %s1448 = scalar_lea.hbm %s16, %s1447
          %s1450 = sshll.u32 %s1427, 4
          %s1451 = int_to_ptr.vmem [resolvable:$true] %s1450
          %1453 = dma.vmem_to_hbm [thread:$0]  %s1451, 16, %s1448, %s1425
        $region96: #{textnet_forward.1} parent=79 // pred_fallthru
          _
      $region80: #{textnet_forward.1} parent=5 // pred_fallthru
        _
      %p1454 = scmp.le.s32.totalorder 2, %s29
      // Predicated region
      $region97: #{textnet_forward.1} parent=5 // pred_check
        %p1455 = pneg %p1454
      $region98: #{textnet_forward.1} parent=5 // pred_check_branch
        %1457 = sbr.rel (%p1455) target = $region100
      $region99: #{textnet_forward.1} parent=5 // pred_region
        %s1458 = ssub.s32 %s29, 2
        // Predicated region
        $region101: #{textnet_forward.1} parent=99 // pred_check
          %p1459 = pneg %p445
        $region102: #{textnet_forward.1} parent=99 // pred_check_branch
          %1461 = sbr.rel (%p1459) target = $region104
        $region103: #{textnet_forward.1} parent=99 // pred_region
          %s1462 = sand.u32 %s430, 1
          %s1463 = scalar_lea.sflag [#allocation4], %s1462
          %s1464 = sand.u32 %s430, 1
          %s1465 = scalar_lea.vmem [#allocation3], %s1464
          %1466 = dma.done %s1463, 16
        $region104: #{textnet_forward.1} parent=99 // pred_fallthru
          _
        // Predicated region
        $region105: #{textnet_forward.1} parent=99 // pred_check
          %p1467 = pneg %p471
        $region106: #{textnet_forward.1} parent=99 // pred_check_branch
          %1469 = sbr.rel (%p1467) target = $region108
        $region107: #{textnet_forward.1} parent=99 // pred_region
          %s1470 = sand.u32 %s456, 1
          %s1471 = scalar_lea.sflag [#allocation6], %s1470
          %s1472 = sand.u32 %s456, 1
          %s1473 = scalar_lea.vmem [#allocation5], %s1472
          %1474 = dma.done %s1471, 16
        $region108: #{textnet_forward.1} parent=99 // pred_fallthru
          _
      $region100: #{textnet_forward.1} parent=5 // pred_fallthru
        _
    $region6: #{textnet_forward.1} parent=1 // loop_footer
      %s33 = sadd.s32 1, %s29
    $region7: #{textnet_forward.1} parent=1 // loop_footer_branch
      %28 = sbr.rel target = $region3
    $region8: #{textnet_forward.1} parent=1 // loop_exit
      _
    %1475 = vsyncpa [#allocation4], 1
    %s1476 = scalar_lea.sflag [#allocation4], 1
    %1477 = vsyncpa %s1476, 1
    %1478 = vsyncpa [#allocation6], 1
    %s1479 = scalar_lea.sflag [#allocation6], 1
    %1480 = vsyncpa %s1479, 1

</llo_original>
